<compile_context>
chip_gen: v7x
topology: tpu7x:2x2x1
jax: 0.10.0
libtpu: 0.0.40
codegen_flags: <defaults>
</compile_context>

<pallas_src>
import functools

import jax
import jax.numpy as jnp
from jax.experimental import pallas as pl
from jax.experimental.pallas import tpu as pltpu


def _layernorm(x, w, b, eps=1e-5):
    mu = jnp.mean(x, axis=-1, keepdims=True)
    var = jnp.mean((x - mu) ** 2, axis=-1, keepdims=True)
    return (x - mu) * jax.lax.rsqrt(var + eps) * w + b


# ---------------------------------------------------------------------------
# Kernel 1:  x1 = x + proj(MHSA(LN1(x)))
# ---------------------------------------------------------------------------
def attn_block_kernel(x_ref,
                      ln1w_ref, ln1b_ref,
                      qw_ref, kw_ref, vw_ref,   # (H, C, hd) bf16, softmax scale folded into q
                      projw_ref,                # (H, hd, C) bf16 per-head projection slabs
                      projb_ref,                # (1, C) f32
                      out_ref,
                      acc_ref,                  # (N, C) f32 lane-dense VMEM accumulator
                      *, num_heads, unroll_heads):
    x = x_ref[0]                                            # (N, C) f32
    xn = _layernorm(x, ln1w_ref[0], ln1b_ref[0])
    xb = xn.astype(jnp.bfloat16)

    acc_ref[...] = jnp.zeros_like(acc_ref)

    def head_body(h, carry):
        # Per-head QKV projections: full K=C contraction width, hd output columns.
        qh = jnp.dot(xb, qw_ref[h], preferred_element_type=jnp.float32).astype(jnp.bfloat16)
        kh = jnp.dot(xb, kw_ref[h], preferred_element_type=jnp.float32).astype(jnp.bfloat16)
        vh = jnp.dot(xb, vw_ref[h], preferred_element_type=jnp.float32).astype(jnp.bfloat16)
        # s = qh @ kh.T expressed via dot_general (no transpose materialized);
        # the softmax scale was folded into the Q weight host-side.
        s = jax.lax.dot_general(qh, kh, (((1,), (1,)), ((), ())),
                                preferred_element_type=jnp.float32)        # (N, N) f32
        s = s - jnp.max(s, axis=-1, keepdims=True)
        p = jnp.exp(s)
        p = p * pl.reciprocal(jnp.sum(p, axis=-1, keepdims=True), approx=True)
        oh = jnp.dot(p.astype(jnp.bfloat16), vh,
                     preferred_element_type=jnp.float32)                   # (N, hd) f32
        # Fold the output projection per head: lane-dense (N, C) accumulation. No sub-128-lane
        # column stores and no accumulator readback before the projection matmul.
        acc_ref[...] += jnp.dot(oh.astype(jnp.bfloat16), projw_ref[h],
                                preferred_element_type=jnp.float32)        # (N, C) f32
        return carry

    jax.lax.fori_loop(0, num_heads, head_body, 0, unroll=unroll_heads)

    out_ref[0] = (x_ref[0] + acc_ref[...] + projb_ref[0]).astype(out_ref.dtype)


# ---------------------------------------------------------------------------
# Kernel 2:  out = x1 + fc2(GELU(fc1(LN2(x1))))   (rows flattened to (B*N, C), row-tiled)
# ---------------------------------------------------------------------------
def mlp_block_kernel(x_ref,
                     ln2w_ref, ln2b_ref,
                     fc1w_ref, fc1b_ref,
                     fc2w_ref, fc2b_ref,
                     out_ref):
    x = x_ref[...]                                          # (tr, C) f32
    xn = _layernorm(x, ln2w_ref[0], ln2b_ref[0])
    h = jnp.dot(xn.astype(jnp.bfloat16), fc1w_ref[...],
                preferred_element_type=jnp.float32) + fc1b_ref[0]
    h = jax.nn.gelu(h, approximate=False)                   # exact erf-GELU (matches nn.GELU)
    y = jnp.dot(h.astype(jnp.bfloat16), fc2w_ref[...],
                preferred_element_type=jnp.float32) + fc2b_ref[0]
    out_ref[...] = (x + y).astype(out_ref.dtype)


# ---------------------------------------------------------------------------
# Host-side helpers
# ---------------------------------------------------------------------------
@functools.lru_cache(maxsize=1)
def _usable_vmem_bytes():
    """Per-generation VMEM budget (leave headroom for Mosaic internal scratch)."""
    try:
        cap = int(pltpu.get_tpu_info().vmem_capacity_bytes)
    except Exception:
        cap = 64 * 1024 * 1024              # conservative default (valid on v7x as well)
    if cap > (64 << 20):
        return cap - (24 << 20)             # ~104 MiB on v5e / v6e (128 MiB physical)
    return cap - (8 << 20)                  # ~56 MiB on v7x (64 MiB physical per TC)


@functools.lru_cache(maxsize=1)
def _supports_single_buffered_specs():
    """Feature-probe pl.Buffered(1) (single-buffered constant weight blocks)."""
    if not hasattr(pl, "Buffered"):
        return False

    def _k(a_ref, o_ref):
        o_ref[...] = a_ref[...] + 1.0

    try:
        spec = pl.BlockSpec((8, 128), lambda i: (0, 0), pipeline_mode=pl.Buffered(1))
        fn = pl.pallas_call(
            _k,
            out_shape=jax.ShapeDtypeStruct((8, 128), jnp.float32),
            grid=(1,),
            in_specs=[spec],
            out_specs=pl.BlockSpec((8, 128), lambda i: (0, 0)))
        jax.block_until_ready(fn(jnp.zeros((8, 128), jnp.float32)))
        return True
    except Exception:
        return False


def prepare_params(params, *, num_heads):
    """One-time host-side weight preprocessing:
       - split qkv into per-head slabs (H, C, hd); fold the softmax scale into the Q columns,
       - reshape the output projection into per-head slabs (H, hd, C),
       - cast all Linear weights to bf16 (MXU inputs); LN params / biases stay f32."""
    C = params["qkv_w"].shape[0]
    hd = C // num_heads
    scale = hd ** (-0.5)
    qkv_w = params["qkv_w"]                        # (C, 3C), (in, out) layout
    bf, f32 = jnp.bfloat16, jnp.float32

    def per_head(w):                               # (C, C) -> (H, C, hd)
        return w.reshape(C, num_heads, hd).transpose(1, 0, 2)

    return {
        "ln1_w": params["ln1_w"].astype(f32),
        "ln1_b": params["ln1_b"].astype(f32),
        "q_w": per_head(qkv_w[:, 0:C] * scale).astype(bf),
        "k_w": per_head(qkv_w[:, C:2 * C]).astype(bf),
        "v_w": per_head(qkv_w[:, 2 * C:3 * C]).astype(bf),
        "proj_w": params["proj_w"].reshape(num_heads, hd, C).astype(bf),
        "proj_b": params["proj_b"].astype(f32),
        "ln2_w": params["ln2_w"].astype(f32),
        "ln2_b": params["ln2_b"].astype(f32),
        "fc1_w": params["fc1_w"].astype(bf),
        "fc1_b": params["fc1_b"].astype(f32),
        "fc2_w": params["fc2_w"].astype(bf),
        "fc2_b": params["fc2_b"].astype(f32),
    }


def deit_block(x, prep, *, num_heads):
    B, N, C = x.shape
    hd = C // num_heads
    H = prep["fc1_w"].shape[1]
    usable = _usable_vmem_bytes()
    single_buf = _supports_single_buffered_specs()

    def wspec(shape, index_map):
        # Constant-index weight blocks: single-buffer when supported (halves weight residency).
        if single_buf:
            return pl.BlockSpec(shape, index_map, pipeline_mode=pl.Buffered(1))
        return pl.BlockSpec(shape, index_map)

    # ----- attention + residual, grid over batch -----
    attn_vmem = min(
        usable,
        4 * N * C * 4                        # x / out blocks (double-buffered)
        + 2 * (4 * C * C * 2)                # q/k/v/proj bf16 weight slabs (x2 safety margin)
        + N * C * 4                          # f32 accumulator scratch
        + 4 * N * C * 4 + 4 * N * N * 4      # in-kernel intermediates
        + (8 << 20))                         # headroom

    c2 = lambda b: (0, 0)
    c3 = lambda b: (0, 0, 0)
    x1 = pl.pallas_call(
        functools.partial(attn_block_kernel, num_heads=num_heads,
                          unroll_heads=bool(num_heads <= 4)),
        out_shape=jax.ShapeDtypeStruct((B, N, C), x.dtype),
        grid=(B,),
        in_specs=[
            pl.BlockSpec((1, N, C), lambda b: (b, 0, 0)),          # x
            wspec((1, C), c2), wspec((1, C), c2),                  # ln1 w, b
            wspec((num_heads, C, hd), c3),                         # q weight (scale folded in)
            wspec((num_heads, C, hd), c3),                         # k weight
            wspec((num_heads, C, hd), c3),                         # v weight
            wspec((num_heads, hd, C), c3),                         # proj weight (per-head slabs)
            wspec((1, C), c2),                                     # proj bias
        ],
        out_specs=pl.BlockSpec((1, N, C), lambda b: (b, 0, 0)),
        scratch_shapes=[pltpu.VMEM((N, C), jnp.float32)],
        compiler_params=pltpu.CompilerParams(
            dimension_semantics=("parallel",),
            vmem_limit_bytes=int(attn_vmem)),
    )(x,
      prep["ln1_w"], prep["ln1_b"],
      prep["q_w"], prep["k_w"], prep["v_w"],
      prep["proj_w"], prep["proj_b"])

    # ----- MLP + residual: tokens flattened to rows, grid over row tiles -----
    # TODO(synk): x1 round-trips HBM in f32 between the two kernels (residual precision);
    # carry bf16 or fuse the MLP if that precision loss is acceptable.
    rows = B * N
    row_tile = 512 if usable >= (96 << 20) else 256      # bigger tiles on 128 MiB parts
    tr = rows if rows <= row_tile else row_tile
    x1_flat = x1.reshape(rows, C)

    mlp_vmem = min(
        usable,
        4 * tr * C * 4                       # x1 / out row blocks (double-buffered)
        + 2 * (2 * C * H * 2)                # fc1/fc2 bf16 weights (x2 safety margin)
        + 4 * tr * H * 4 + 2 * tr * C * 4    # GELU activation + intermediates
        + (8 << 20))                         # headroom

    cm = lambda r: (0, 0)
    out_flat = pl.pallas_call(
        mlp_block_kernel,
        out_shape=jax.ShapeDtypeStruct((rows, C), x.dtype),
        grid=(pl.cdiv(rows, tr),),
        in_specs=[
            pl.BlockSpec((tr, C), lambda r: (r, 0)),               # x1 row tile
            wspec((1, C), cm), wspec((1, C), cm),                  # ln2 w, b
            wspec((C, H), cm), wspec((1, H), cm),                  # fc1 w, b
            wspec((H, C), cm), wspec((1, C), cm),                  # fc2 w, b
        ],
        out_specs=pl.BlockSpec((tr, C), lambda r: (r, 0)),
        compiler_params=pltpu.CompilerParams(
            dimension_semantics=("parallel",),
            vmem_limit_bytes=int(mlp_vmem)),
    )(x1_flat,
      prep["ln2_w"], prep["ln2_b"],
      prep["fc1_w"], prep["fc1_b"],
      prep["fc2_w"], prep["fc2_b"])
    return out_flat.reshape(B, N, C)


def reference_block(x, params, *, num_heads):
    """Pure-JAX f32 reference mirroring the PyTorch forward."""
    B, N, C = x.shape
    hd = C // num_heads
    scale = hd ** (-0.5)

    def ln(z, w, b):
        mu = jnp.mean(z, -1, keepdims=True)
        var = jnp.mean((z - mu) ** 2, -1, keepdims=True)
        return (z - mu) / jnp.sqrt(var + 1e-5) * w + b

    xn = ln(x, params["ln1_w"][0], params["ln1_b"][0])
    qkv = xn @ params["qkv_w"]                           # (B,N,3C)
    qkv = qkv.reshape(B, N, 3, num_heads, hd).transpose(2, 0, 3, 1, 4)
    q, k, v = qkv[0], qkv[1], qkv[2]                     # (B,H,N,hd)
    att = jnp.einsum("bhnd,bhmd->bhnm", q, k) * scale
    att = jax.nn.softmax(att, axis=-1)
    o = jnp.einsum("bhnm,bhmd->bhnd", att, v)
    o = o.transpose(0, 2, 1, 3).reshape(B, N, C)
    o = o @ params["proj_w"] + params["proj_b"][0]
    x1 = x + o
    xn2 = ln(x1, params["ln2_w"][0], params["ln2_b"][0])
    h = jax.nn.gelu(xn2 @ params["fc1_w"] + params["fc1_b"][0], approximate=False)
    h = h @ params["fc2_w"] + params["fc2_b"][0]
    return x1 + h


if __name__ == "__main__":
    # Small DeiT-style block: dim=32, heads=4, mlp_ratio=4, qkv_bias=False
    B, N, C = 2, 8, 32
    num_heads = 4
    Hdim = int(C * 4.0)

    key = jax.random.PRNGKey(0)
    ks = jax.random.split(key, 8)

    params = {
        "ln1_w": jnp.ones((1, C), jnp.float32),
        "ln1_b": jnp.zeros((1, C), jnp.float32),
        # linear weights stored already transposed to (in, out)
        "qkv_w": jax.random.normal(ks[0], (C, 3 * C), jnp.float32) * 0.05,
        "proj_w": jax.random.normal(ks[1], (C, C), jnp.float32) * 0.05,
        "proj_b": jax.random.normal(ks[2], (1, C), jnp.float32) * 0.01,
        "ln2_w": jnp.ones((1, C), jnp.float32),
        "ln2_b": jnp.zeros((1, C), jnp.float32),
        "fc1_w": jax.random.normal(ks[3], (C, Hdim), jnp.float32) * 0.05,
        "fc1_b": jax.random.normal(ks[4], (1, Hdim), jnp.float32) * 0.01,
        "fc2_w": jax.random.normal(ks[5], (Hdim, C), jnp.float32) * 0.05,
        "fc2_b": jax.random.normal(ks[6], (1, C), jnp.float32) * 0.01,
    }
    x = jax.random.normal(ks[7], (B, N, C), jnp.float32)

    prep = prepare_params(params, num_heads=num_heads)   # one-time weight preprocessing
    out = deit_block(x, prep, num_heads=num_heads)
    out = jax.block_until_ready(out)

    ref = reference_block(x, params, num_heads=num_heads)
    assert out.shape == (B, N, C)
    max_err = float(jnp.max(jnp.abs(out - ref)))
    # bf16 MXU inputs + approximate reciprocal in the softmax -> loosened tolerance vs f32 reference
    assert jnp.allclose(out, ref, atol=3e-2, rtol=3e-2), max_err

    print("KERNEL_OK")
</pallas_src>

<mosaic_0001>
module attributes {stable_mosaic.version = 11 : i64} {
  func.func @_k(%arg0: i32, %arg1: memref<8x128xf32, #tpu.memory_space<vmem>>, %arg2: memref<8x128xf32, #tpu.memory_space<vmem>>) attributes {dimension_semantics = [#tpu.dimension_semantics<arbitrary>], iteration_bounds = array<i64: 1>, scalar_prefetch = 0 : i64, scratch_operands = 0 : i64, tpu.core_type = #tpu.core_type<tc>, window_params = [{pipeline_mode = #tpu.pipeline_mode<synchronous>, transform_indices = @transform_0, window_bounds = array<i64: 8, 128>}, {pipeline_mode = #tpu.pipeline_mode<synchronous>, transform_indices = @transform_1, window_bounds = array<i64: 8, 128>}]} {
    %c0 = arith.constant 0 : index
    %c0_0 = arith.constant 0 : index
    %0 = vector.load %arg1[%c0, %c0_0] : memref<8x128xf32, #tpu.memory_space<vmem>>, vector<8x128xf32>
    %cst = arith.constant 1.000000e+00 : f32
    %1 = vector.broadcast %cst : f32 to vector<8x128xf32>
    %2 = arith.addf %0, %1 : vector<8x128xf32>
    %c0_1 = arith.constant 0 : index
    %c0_2 = arith.constant 0 : index
    %3 = vector.load %arg2[%c0_1, %c0_2] : memref<8x128xf32, #tpu.memory_space<vmem>>, vector<8x128xf32>
    tpu.vector_store %arg2[%c0_1, %c0_2], %2 {strides = array<i32>} : memref<8x128xf32, #tpu.memory_space<vmem>>, vector<8x128xf32>,
    return
  }
  func.func @transform_0(%arg0: i32) -> (i32, i32) {
    %c0_i32 = arith.constant 0 : i32
    %c0_i32_0 = arith.constant 0 : i32
    %c0_i32_1 = arith.constant 0 : i32
    return %c0_i32, %c0_i32_0 : i32, i32
  }
  func.func @transform_1(%arg0: i32) -> (i32, i32) {
    %c0_i32 = arith.constant 0 : i32
    %c0_i32_0 = arith.constant 0 : i32
    %c0_i32_1 = arith.constant 0 : i32
    return %c0_i32, %c0_i32_0 : i32, i32
  }
}

module attributes {stable_mosaic.version = 11 : i64} {
  func.func @attn_block_kernel(%arg0: i32, %arg1: memref<1x8x32xf32, #tpu.memory_space<vmem>>, %arg2: memref<1x32xf32, #tpu.memory_space<vmem>>, %arg3: memref<1x32xf32, #tpu.memory_space<vmem>>, %arg4: memref<4x32x8xbf16, #tpu.memory_space<vmem>>, %arg5: memref<4x32x8xbf16, #tpu.memory_space<vmem>>, %arg6: memref<4x32x8xbf16, #tpu.memory_space<vmem>>, %arg7: memref<4x8x32xbf16, #tpu.memory_space<vmem>>, %arg8: memref<1x32xf32, #tpu.memory_space<vmem>>, %arg9: memref<1x8x32xf32, #tpu.memory_space<vmem>>, %arg10: memref<8x32xf32, #tpu.memory_space<vmem>>) attributes {dimension_semantics = [#tpu.dimension_semantics<parallel>], iteration_bounds = array<i64: 2>, scalar_prefetch = 0 : i64, scratch_operands = 1 : i64, tpu.core_type = #tpu.core_type<tc>, window_params = [{transform_indices = @transform_0, window_bounds = array<i64: 1, 8, 32>}, {pipeline_mode = #tpu.pipeline_mode<synchronous>, transform_indices = @transform_1, window_bounds = array<i64: 1, 32>}, {pipeline_mode = #tpu.pipeline_mode<synchronous>, transform_indices = @transform_2, window_bounds = array<i64: 1, 32>}, {pipeline_mode = #tpu.pipeline_mode<synchronous>, transform_indices = @transform_3, window_bounds = array<i64: 4, 32, 8>}, {pipeline_mode = #tpu.pipeline_mode<synchronous>, transform_indices = @transform_4, window_bounds = array<i64: 4, 32, 8>}, {pipeline_mode = #tpu.pipeline_mode<synchronous>, transform_indices = @transform_5, window_bounds = array<i64: 4, 32, 8>}, {pipeline_mode = #tpu.pipeline_mode<synchronous>, transform_indices = @transform_6, window_bounds = array<i64: 4, 8, 32>}, {pipeline_mode = #tpu.pipeline_mode<synchronous>, transform_indices = @transform_7, window_bounds = array<i64: 1, 32>}, {transform_indices = @transform_8, window_bounds = array<i64: 1, 8, 32>}]} {
    %c0 = arith.constant 0 : index
    %c0_0 = arith.constant 0 : index
    %c0_1 = arith.constant 0 : index
    %0 = vector.load %arg1[%c0, %c0_0, %c0_1] : memref<1x8x32xf32, #tpu.memory_space<vmem>>, vector<1x8x32xf32>
    %1 = vector.shape_cast %0 : vector<1x8x32xf32> to vector<8x32xf32>
    %c0_2 = arith.constant 0 : index
    %c0_3 = arith.constant 0 : index
    %2 = vector.load %arg2[%c0_2, %c0_3] : memref<1x32xf32, #tpu.memory_space<vmem>>, vector<1x32xf32>
    %3 = vector.shape_cast %2 : vector<1x32xf32> to vector<32xf32>
    %c0_4 = arith.constant 0 : index
    %c0_5 = arith.constant 0 : index
    %4 = vector.load %arg3[%c0_4, %c0_5] : memref<1x32xf32, #tpu.memory_space<vmem>>, vector<1x32xf32>
    %5 = vector.shape_cast %4 : vector<1x32xf32> to vector<32xf32>
    %cst = arith.constant dense<0.000000e+00> : vector<8xf32>
    %6 = vector.multi_reduction <add>, %1, %cst [1] : vector<8x32xf32> to vector<8xf32>
    %7 = vector.shape_cast %6 : vector<8xf32> to vector<8x1xf32>
    %cst_6 = arith.constant 3.200000e+01 : f32
    %8 = vector.broadcast %cst_6 : f32 to vector<8x1xf32>
    %9 = arith.divf %7, %8 : vector<8x1xf32>
    %10 = vector.broadcast %9 : vector<8x1xf32> to vector<8x32xf32>
    %11 = arith.subf %1, %10 : vector<8x32xf32>
    %12 = arith.mulf %11, %11 : vector<8x32xf32>
    %cst_7 = arith.constant dense<0.000000e+00> : vector<8xf32>
    %13 = vector.multi_reduction <add>, %12, %cst_7 [1] : vector<8x32xf32> to vector<8xf32>
    %14 = vector.shape_cast %13 : vector<8xf32> to vector<8x1xf32>
    %cst_8 = arith.constant 3.200000e+01 : f32
    %15 = vector.broadcast %cst_8 : f32 to vector<8x1xf32>
    %16 = arith.divf %14, %15 : vector<8x1xf32>
    %17 = vector.broadcast %9 : vector<8x1xf32> to vector<8x32xf32>
    %18 = arith.subf %1, %17 : vector<8x32xf32>
    %cst_9 = arith.constant 9.99999974E-6 : f32
    %19 = vector.broadcast %cst_9 : f32 to vector<8x1xf32>
    %20 = arith.addf %16, %19 : vector<8x1xf32>
    %21 = math.rsqrt %20 : vector<8x1xf32>
    %22 = vector.broadcast %21 : vector<8x1xf32> to vector<8x32xf32>
    %23 = arith.mulf %18, %22 : vector<8x32xf32>
    %24 = vector.shape_cast %3 : vector<32xf32> to vector<1x32xf32>
    %25 = vector.broadcast %24 : vector<1x32xf32> to vector<8x32xf32>
    %26 = arith.mulf %23, %25 : vector<8x32xf32>
    %27 = vector.shape_cast %5 : vector<32xf32> to vector<1x32xf32>
    %28 = vector.broadcast %27 : vector<1x32xf32> to vector<8x32xf32>
    %29 = arith.addf %26, %28 : vector<8x32xf32>
    %30 = arith.truncf %29 : vector<8x32xf32> to vector<8x32xbf16>
    %cst_10 = arith.constant 0.000000e+00 : f32
    %31 = vector.broadcast %cst_10 : f32 to vector<8x32xf32>
    %c0_11 = arith.constant 0 : index
    %c0_12 = arith.constant 0 : index
    %32 = vector.load %arg10[%c0_11, %c0_12] : memref<8x32xf32, #tpu.memory_space<vmem>>, vector<8x32xf32>
    tpu.vector_store %arg10[%c0_11, %c0_12], %31 {strides = array<i32>} : memref<8x32xf32, #tpu.memory_space<vmem>>, vector<8x32xf32>,
    %c0_i32 = arith.constant 0 : i32
    %33 = arith.index_cast %c0_i32 : i32 to index
    %c0_13 = arith.constant 0 : index
    %c0_14 = arith.constant 0 : index
    %34 = vector.load %arg4[%33, %c0_13, %c0_14] : memref<4x32x8xbf16, #tpu.memory_space<vmem>>, vector<1x32x8xbf16>
    %35 = vector.shape_cast %34 : vector<1x32x8xbf16> to vector<32x8xbf16>
    %cst_15 = arith.constant dense<0.000000e+00> : vector<8x8xf32>
    %36 = tpu.matmul %30, %35, %cst_15 {dimension_numbers = #tpu.dot_dimension_numbers<[1], [0], [0], [1], [0, 0, 1, 1], [], []>} : vector<8x32xbf16>, vector<32x8xbf16>, vector<8x8xf32> -> vector<8x8xf32>
    %37 = arith.truncf %36 : vector<8x8xf32> to vector<8x8xbf16>
    %38 = arith.index_cast %c0_i32 : i32 to index
    %c0_16 = arith.constant 0 : index
    %c0_17 = arith.constant 0 : index
    %39 = vector.load %arg5[%38, %c0_16, %c0_17] : memref<4x32x8xbf16, #tpu.memory_space<vmem>>, vector<1x32x8xbf16>
    %40 = vector.shape_cast %39 : vector<1x32x8xbf16> to vector<32x8xbf16>
    %cst_18 = arith.constant dense<0.000000e+00> : vector<8x8xf32>
    %41 = tpu.matmul %30, %40, %cst_18 {dimension_numbers = #tpu.dot_dimension_numbers<[1], [0], [0], [1], [0, 0, 1, 1], [], []>} : vector<8x32xbf16>, vector<32x8xbf16>, vector<8x8xf32> -> vector<8x8xf32>
    %42 = arith.truncf %41 : vector<8x8xf32> to vector<8x8xbf16>
    %43 = arith.index_cast %c0_i32 : i32 to index
    %c0_19 = arith.constant 0 : index
    %c0_20 = arith.constant 0 : index
    %44 = vector.load %arg6[%43, %c0_19, %c0_20] : memref<4x32x8xbf16, #tpu.memory_space<vmem>>, vector<1x32x8xbf16>
    %45 = vector.shape_cast %44 : vector<1x32x8xbf16> to vector<32x8xbf16>
    %cst_21 = arith.constant dense<0.000000e+00> : vector<8x8xf32>
    %46 = tpu.matmul %30, %45, %cst_21 {dimension_numbers = #tpu.dot_dimension_numbers<[1], [0], [0], [1], [0, 0, 1, 1], [], []>} : vector<8x32xbf16>, vector<32x8xbf16>, vector<8x8xf32> -> vector<8x8xf32>
    %47 = arith.truncf %46 : vector<8x8xf32> to vector<8x8xbf16>
    %cst_22 = arith.constant dense<0.000000e+00> : vector<8x8xf32>
    %48 = tpu.matmul %37, %42, %cst_22 {dimension_numbers = #tpu.dot_dimension_numbers<[1], [1], [0], [0], [0, 0, 1, 0], [], []>} : vector<8x8xbf16>, vector<8x8xbf16>, vector<8x8xf32> -> vector<8x8xf32>
    %cst_23 = arith.constant dense<0xFF800000> : vector<8xf32>
    %49 = vector.multi_reduction <maximumf>, %48, %cst_23 [1] : vector<8x8xf32> to vector<8xf32>
    %50 = vector.shape_cast %49 : vector<8xf32> to vector<8x1xf32>
    %51 = vector.broadcast %50 : vector<8x1xf32> to vector<8x8xf32>
    %52 = arith.subf %48, %51 : vector<8x8xf32>
    %53 = math.exp %52 : vector<8x8xf32>
    %cst_24 = arith.constant dense<0.000000e+00> : vector<8xf32>
    %54 = vector.multi_reduction <add>, %53, %cst_24 [1] : vector<8x8xf32> to vector<8xf32>
    %55 = vector.shape_cast %54 : vector<8xf32> to vector<8x1xf32>
    %56 = tpu.reciprocal %55 {approx = true} : vector<8x1xf32> -> vector<8x1xf32>
    %57 = vector.broadcast %56 : vector<8x1xf32> to vector<8x8xf32>
    %58 = arith.mulf %53, %57 : vector<8x8xf32>
    %59 = arith.truncf %58 : vector<8x8xf32> to vector<8x8xbf16>
    %cst_25 = arith.constant dense<0.000000e+00> : vector<8x8xf32>
    %60 = tpu.matmul %59, %47, %cst_25 {dimension_numbers = #tpu.dot_dimension_numbers<[1], [0], [0], [1], [0, 0, 1, 1], [], []>} : vector<8x8xbf16>, vector<8x8xbf16>, vector<8x8xf32> -> vector<8x8xf32>
    %c0_26 = arith.constant 0 : index
    %c0_27 = arith.constant 0 : index
    %61 = vector.load %arg10[%c0_26, %c0_27] : memref<8x32xf32, #tpu.memory_space<vmem>>, vector<8x32xf32>
    %62 = arith.truncf %60 : vector<8x8xf32> to vector<8x8xbf16>
    %63 = arith.index_cast %c0_i32 : i32 to index
    %c0_28 = arith.constant 0 : index
    %c0_29 = arith.constant 0 : index
    %64 = vector.load %arg7[%63, %c0_28, %c0_29] : memref<4x8x32xbf16, #tpu.memory_space<vmem>>, vector<1x8x32xbf16>
    %65 = vector.shape_cast %64 : vector<1x8x32xbf16> to vector<8x32xbf16>
    %cst_30 = arith.constant dense<0.000000e+00> : vector<8x32xf32>
    %66 = tpu.matmul %62, %65, %cst_30 {dimension_numbers = #tpu.dot_dimension_numbers<[1], [0], [0], [1], [0, 0, 1, 1], [], []>} : vector<8x8xbf16>, vector<8x32xbf16>, vector<8x32xf32> -> vector<8x32xf32>
    %67 = arith.addf %61, %66 : vector<8x32xf32>
    %c0_31 = arith.constant 0 : index
    %c0_32 = arith.constant 0 : index
    %68 = vector.load %arg10[%c0_31, %c0_32] : memref<8x32xf32, #tpu.memory_space<vmem>>, vector<8x32xf32>
    tpu.vector_store %arg10[%c0_31, %c0_32], %67 {strides = array<i32>} : memref<8x32xf32, #tpu.memory_space<vmem>>, vector<8x32xf32>,
    %c1_i32 = arith.constant 1 : i32
    %69 = arith.index_cast %c1_i32 : i32 to index
    %c0_33 = arith.constant 0 : index
    %c0_34 = arith.constant 0 : index
    %70 = vector.load %arg4[%69, %c0_33, %c0_34] : memref<4x32x8xbf16, #tpu.memory_space<vmem>>, vector<1x32x8xbf16>
    %71 = vector.shape_cast %70 : vector<1x32x8xbf16> to vector<32x8xbf16>
    %cst_35 = arith.constant dense<0.000000e+00> : vector<8x8xf32>
    %72 = tpu.matmul %30, %71, %cst_35 {dimension_numbers = #tpu.dot_dimension_numbers<[1], [0], [0], [1], [0, 0, 1, 1], [], []>} : vector<8x32xbf16>, vector<32x8xbf16>, vector<8x8xf32> -> vector<8x8xf32>
    %73 = arith.truncf %72 : vector<8x8xf32> to vector<8x8xbf16>
    %74 = arith.index_cast %c1_i32 : i32 to index
    %c0_36 = arith.constant 0 : index
    %c0_37 = arith.constant 0 : index
    %75 = vector.load %arg5[%74, %c0_36, %c0_37] : memref<4x32x8xbf16, #tpu.memory_space<vmem>>, vector<1x32x8xbf16>
    %76 = vector.shape_cast %75 : vector<1x32x8xbf16> to vector<32x8xbf16>
    %cst_38 = arith.constant dense<0.000000e+00> : vector<8x8xf32>
    %77 = tpu.matmul %30, %76, %cst_38 {dimension_numbers = #tpu.dot_dimension_numbers<[1], [0], [0], [1], [0, 0, 1, 1], [], []>} : vector<8x32xbf16>, vector<32x8xbf16>, vector<8x8xf32> -> vector<8x8xf32>
    %78 = arith.truncf %77 : vector<8x8xf32> to vector<8x8xbf16>
    %79 = arith.index_cast %c1_i32 : i32 to index
    %c0_39 = arith.constant 0 : index
    %c0_40 = arith.constant 0 : index
    %80 = vector.load %arg6[%79, %c0_39, %c0_40] : memref<4x32x8xbf16, #tpu.memory_space<vmem>>, vector<1x32x8xbf16>
    %81 = vector.shape_cast %80 : vector<1x32x8xbf16> to vector<32x8xbf16>
    %cst_41 = arith.constant dense<0.000000e+00> : vector<8x8xf32>
    %82 = tpu.matmul %30, %81, %cst_41 {dimension_numbers = #tpu.dot_dimension_numbers<[1], [0], [0], [1], [0, 0, 1, 1], [], []>} : vector<8x32xbf16>, vector<32x8xbf16>, vector<8x8xf32> -> vector<8x8xf32>
    %83 = arith.truncf %82 : vector<8x8xf32> to vector<8x8xbf16>
    %cst_42 = arith.constant dense<0.000000e+00> : vector<8x8xf32>
    %84 = tpu.matmul %73, %78, %cst_42 {dimension_numbers = #tpu.dot_dimension_numbers<[1], [1], [0], [0], [0, 0, 1, 0], [], []>} : vector<8x8xbf16>, vector<8x8xbf16>, vector<8x8xf32> -> vector<8x8xf32>
    %cst_43 = arith.constant dense<0xFF800000> : vector<8xf32>
    %85 = vector.multi_reduction <maximumf>, %84, %cst_43 [1] : vector<8x8xf32> to vector<8xf32>
    %86 = vector.shape_cast %85 : vector<8xf32> to vector<8x1xf32>
    %87 = vector.broadcast %86 : vector<8x1xf32> to vector<8x8xf32>
    %88 = arith.subf %84, %87 : vector<8x8xf32>
    %89 = math.exp %88 : vector<8x8xf32>
    %cst_44 = arith.constant dense<0.000000e+00> : vector<8xf32>
    %90 = vector.multi_reduction <add>, %89, %cst_44 [1] : vector<8x8xf32> to vector<8xf32>
    %91 = vector.shape_cast %90 : vector<8xf32> to vector<8x1xf32>
    %92 = tpu.reciprocal %91 {approx = true} : vector<8x1xf32> -> vector<8x1xf32>
    %93 = vector.broadcast %92 : vector<8x1xf32> to vector<8x8xf32>
    %94 = arith.mulf %89, %93 : vector<8x8xf32>
    %95 = arith.truncf %94 : vector<8x8xf32> to vector<8x8xbf16>
    %cst_45 = arith.constant dense<0.000000e+00> : vector<8x8xf32>
    %96 = tpu.matmul %95, %83, %cst_45 {dimension_numbers = #tpu.dot_dimension_numbers<[1], [0], [0], [1], [0, 0, 1, 1], [], []>} : vector<8x8xbf16>, vector<8x8xbf16>, vector<8x8xf32> -> vector<8x8xf32>
    %c0_46 = arith.constant 0 : index
    %c0_47 = arith.constant 0 : index
    %97 = vector.load %arg10[%c0_46, %c0_47] : memref<8x32xf32, #tpu.memory_space<vmem>>, vector<8x32xf32>
    %98 = arith.truncf %96 : vector<8x8xf32> to vector<8x8xbf16>
    %99 = arith.index_cast %c1_i32 : i32 to index
    %c0_48 = arith.constant 0 : index
    %c0_49 = arith.constant 0 : index
    %100 = vector.load %arg7[%99, %c0_48, %c0_49] : memref<4x8x32xbf16, #tpu.memory_space<vmem>>, vector<1x8x32xbf16>
    %101 = vector.shape_cast %100 : vector<1x8x32xbf16> to vector<8x32xbf16>
    %cst_50 = arith.constant dense<0.000000e+00> : vector<8x32xf32>
    %102 = tpu.matmul %98, %101, %cst_50 {dimension_numbers = #tpu.dot_dimension_numbers<[1], [0], [0], [1], [0, 0, 1, 1], [], []>} : vector<8x8xbf16>, vector<8x32xbf16>, vector<8x32xf32> -> vector<8x32xf32>
    %103 = arith.addf %97, %102 : vector<8x32xf32>
    %c0_51 = arith.constant 0 : index
    %c0_52 = arith.constant 0 : index
    %104 = vector.load %arg10[%c0_51, %c0_52] : memref<8x32xf32, #tpu.memory_space<vmem>>, vector<8x32xf32>
    tpu.vector_store %arg10[%c0_51, %c0_52], %103 {strides = array<i32>} : memref<8x32xf32, #tpu.memory_space<vmem>>, vector<8x32xf32>,
    %c2_i32 = arith.constant 2 : i32
    %105 = arith.index_cast %c2_i32 : i32 to index
    %c0_53 = arith.constant 0 : index
    %c0_54 = arith.constant 0 : index
    %106 = vector.load %arg4[%105, %c0_53, %c0_54] : memref<4x32x8xbf16, #tpu.memory_space<vmem>>, vector<1x32x8xbf16>
    %107 = vector.shape_cast %106 : vector<1x32x8xbf16> to vector<32x8xbf16>
    %cst_55 = arith.constant dense<0.000000e+00> : vector<8x8xf32>
    %108 = tpu.matmul %30, %107, %cst_55 {dimension_numbers = #tpu.dot_dimension_numbers<[1], [0], [0], [1], [0, 0, 1, 1], [], []>} : vector<8x32xbf16>, vector<32x8xbf16>, vector<8x8xf32> -> vector<8x8xf32>
    %109 = arith.truncf %108 : vector<8x8xf32> to vector<8x8xbf16>
    %110 = arith.index_cast %c2_i32 : i32 to index
    %c0_56 = arith.constant 0 : index
    %c0_57 = arith.constant 0 : index
    %111 = vector.load %arg5[%110, %c0_56, %c0_57] : memref<4x32x8xbf16, #tpu.memory_space<vmem>>, vector<1x32x8xbf16>
    %112 = vector.shape_cast %111 : vector<1x32x8xbf16> to vector<32x8xbf16>
    %cst_58 = arith.constant dense<0.000000e+00> : vector<8x8xf32>
    %113 = tpu.matmul %30, %112, %cst_58 {dimension_numbers = #tpu.dot_dimension_numbers<[1], [0], [0], [1], [0, 0, 1, 1], [], []>} : vector<8x32xbf16>, vector<32x8xbf16>, vector<8x8xf32> -> vector<8x8xf32>
    %114 = arith.truncf %113 : vector<8x8xf32> to vector<8x8xbf16>
    %115 = arith.index_cast %c2_i32 : i32 to index
    %c0_59 = arith.constant 0 : index
    %c0_60 = arith.constant 0 : index
    %116 = vector.load %arg6[%115, %c0_59, %c0_60] : memref<4x32x8xbf16, #tpu.memory_space<vmem>>, vector<1x32x8xbf16>
    %117 = vector.shape_cast %116 : vector<1x32x8xbf16> to vector<32x8xbf16>
    %cst_61 = arith.constant dense<0.000000e+00> : vector<8x8xf32>
    %118 = tpu.matmul %30, %117, %cst_61 {dimension_numbers = #tpu.dot_dimension_numbers<[1], [0], [0], [1], [0, 0, 1, 1], [], []>} : vector<8x32xbf16>, vector<32x8xbf16>, vector<8x8xf32> -> vector<8x8xf32>
    %119 = arith.truncf %118 : vector<8x8xf32> to vector<8x8xbf16>
    %cst_62 = arith.constant dense<0.000000e+00> : vector<8x8xf32>
    %120 = tpu.matmul %109, %114, %cst_62 {dimension_numbers = #tpu.dot_dimension_numbers<[1], [1], [0], [0], [0, 0, 1, 0], [], []>} : vector<8x8xbf16>, vector<8x8xbf16>, vector<8x8xf32> -> vector<8x8xf32>
    %cst_63 = arith.constant dense<0xFF800000> : vector<8xf32>
    %121 = vector.multi_reduction <maximumf>, %120, %cst_63 [1] : vector<8x8xf32> to vector<8xf32>
    %122 = vector.shape_cast %121 : vector<8xf32> to vector<8x1xf32>
    %123 = vector.broadcast %122 : vector<8x1xf32> to vector<8x8xf32>
    %124 = arith.subf %120, %123 : vector<8x8xf32>
    %125 = math.exp %124 : vector<8x8xf32>
    %cst_64 = arith.constant dense<0.000000e+00> : vector<8xf32>
    %126 = vector.multi_reduction <add>, %125, %cst_64 [1] : vector<8x8xf32> to vector<8xf32>
    %127 = vector.shape_cast %126 : vector<8xf32> to vector<8x1xf32>
    %128 = tpu.reciprocal %127 {approx = true} : vector<8x1xf32> -> vector<8x1xf32>
    %129 = vector.broadcast %128 : vector<8x1xf32> to vector<8x8xf32>
    %130 = arith.mulf %125, %129 : vector<8x8xf32>
    %131 = arith.truncf %130 : vector<8x8xf32> to vector<8x8xbf16>
    %cst_65 = arith.constant dense<0.000000e+00> : vector<8x8xf32>
    %132 = tpu.matmul %131, %119, %cst_65 {dimension_numbers = #tpu.dot_dimension_numbers<[1], [0], [0], [1], [0, 0, 1, 1], [], []>} : vector<8x8xbf16>, vector<8x8xbf16>, vector<8x8xf32> -> vector<8x8xf32>
    %c0_66 = arith.constant 0 : index
    %c0_67 = arith.constant 0 : index
    %133 = vector.load %arg10[%c0_66, %c0_67] : memref<8x32xf32, #tpu.memory_space<vmem>>, vector<8x32xf32>
    %134 = arith.truncf %132 : vector<8x8xf32> to vector<8x8xbf16>
    %135 = arith.index_cast %c2_i32 : i32 to index
    %c0_68 = arith.constant 0 : index
    %c0_69 = arith.constant 0 : index
    %136 = vector.load %arg7[%135, %c0_68, %c0_69] : memref<4x8x32xbf16, #tpu.memory_space<vmem>>, vector<1x8x32xbf16>
    %137 = vector.shape_cast %136 : vector<1x8x32xbf16> to vector<8x32xbf16>
    %cst_70 = arith.constant dense<0.000000e+00> : vector<8x32xf32>
    %138 = tpu.matmul %134, %137, %cst_70 {dimension_numbers = #tpu.dot_dimension_numbers<[1], [0], [0], [1], [0, 0, 1, 1], [], []>} : vector<8x8xbf16>, vector<8x32xbf16>, vector<8x32xf32> -> vector<8x32xf32>
    %139 = arith.addf %133, %138 : vector<8x32xf32>
    %c0_71 = arith.constant 0 : index
    %c0_72 = arith.constant 0 : index
    %140 = vector.load %arg10[%c0_71, %c0_72] : memref<8x32xf32, #tpu.memory_space<vmem>>, vector<8x32xf32>
    tpu.vector_store %arg10[%c0_71, %c0_72], %139 {strides = array<i32>} : memref<8x32xf32, #tpu.memory_space<vmem>>, vector<8x32xf32>,
    %c3_i32 = arith.constant 3 : i32
    %141 = arith.index_cast %c3_i32 : i32 to index
    %c0_73 = arith.constant 0 : index
    %c0_74 = arith.constant 0 : index
    %142 = vector.load %arg4[%141, %c0_73, %c0_74] : memref<4x32x8xbf16, #tpu.memory_space<vmem>>, vector<1x32x8xbf16>
    %143 = vector.shape_cast %142 : vector<1x32x8xbf16> to vector<32x8xbf16>
    %cst_75 = arith.constant dense<0.000000e+00> : vector<8x8xf32>
    %144 = tpu.matmul %30, %143, %cst_75 {dimension_numbers = #tpu.dot_dimension_numbers<[1], [0], [0], [1], [0, 0, 1, 1], [], []>} : vector<8x32xbf16>, vector<32x8xbf16>, vector<8x8xf32> -> vector<8x8xf32>
    %145 = arith.truncf %144 : vector<8x8xf32> to vector<8x8xbf16>
    %146 = arith.index_cast %c3_i32 : i32 to index
    %c0_76 = arith.constant 0 : index
    %c0_77 = arith.constant 0 : index
    %147 = vector.load %arg5[%146, %c0_76, %c0_77] : memref<4x32x8xbf16, #tpu.memory_space<vmem>>, vector<1x32x8xbf16>
    %148 = vector.shape_cast %147 : vector<1x32x8xbf16> to vector<32x8xbf16>
    %cst_78 = arith.constant dense<0.000000e+00> : vector<8x8xf32>
    %149 = tpu.matmul %30, %148, %cst_78 {dimension_numbers = #tpu.dot_dimension_numbers<[1], [0], [0], [1], [0, 0, 1, 1], [], []>} : vector<8x32xbf16>, vector<32x8xbf16>, vector<8x8xf32> -> vector<8x8xf32>
    %150 = arith.truncf %149 : vector<8x8xf32> to vector<8x8xbf16>
    %151 = arith.index_cast %c3_i32 : i32 to index
    %c0_79 = arith.constant 0 : index
    %c0_80 = arith.constant 0 : index
    %152 = vector.load %arg6[%151, %c0_79, %c0_80] : memref<4x32x8xbf16, #tpu.memory_space<vmem>>, vector<1x32x8xbf16>
    %153 = vector.shape_cast %152 : vector<1x32x8xbf16> to vector<32x8xbf16>
    %cst_81 = arith.constant dense<0.000000e+00> : vector<8x8xf32>
    %154 = tpu.matmul %30, %153, %cst_81 {dimension_numbers = #tpu.dot_dimension_numbers<[1], [0], [0], [1], [0, 0, 1, 1], [], []>} : vector<8x32xbf16>, vector<32x8xbf16>, vector<8x8xf32> -> vector<8x8xf32>
    %155 = arith.truncf %154 : vector<8x8xf32> to vector<8x8xbf16>
    %cst_82 = arith.constant dense<0.000000e+00> : vector<8x8xf32>
    %156 = tpu.matmul %145, %150, %cst_82 {dimension_numbers = #tpu.dot_dimension_numbers<[1], [1], [0], [0], [0, 0, 1, 0], [], []>} : vector<8x8xbf16>, vector<8x8xbf16>, vector<8x8xf32> -> vector<8x8xf32>
    %cst_83 = arith.constant dense<0xFF800000> : vector<8xf32>
    %157 = vector.multi_reduction <maximumf>, %156, %cst_83 [1] : vector<8x8xf32> to vector<8xf32>
    %158 = vector.shape_cast %157 : vector<8xf32> to vector<8x1xf32>
    %159 = vector.broadcast %158 : vector<8x1xf32> to vector<8x8xf32>
    %160 = arith.subf %156, %159 : vector<8x8xf32>
    %161 = math.exp %160 : vector<8x8xf32>
    %cst_84 = arith.constant dense<0.000000e+00> : vector<8xf32>
    %162 = vector.multi_reduction <add>, %161, %cst_84 [1] : vector<8x8xf32> to vector<8xf32>
    %163 = vector.shape_cast %162 : vector<8xf32> to vector<8x1xf32>
    %164 = tpu.reciprocal %163 {approx = true} : vector<8x1xf32> -> vector<8x1xf32>
    %165 = vector.broadcast %164 : vector<8x1xf32> to vector<8x8xf32>
    %166 = arith.mulf %161, %165 : vector<8x8xf32>
    %167 = arith.truncf %166 : vector<8x8xf32> to vector<8x8xbf16>
    %cst_85 = arith.constant dense<0.000000e+00> : vector<8x8xf32>
    %168 = tpu.matmul %167, %155, %cst_85 {dimension_numbers = #tpu.dot_dimension_numbers<[1], [0], [0], [1], [0, 0, 1, 1], [], []>} : vector<8x8xbf16>, vector<8x8xbf16>, vector<8x8xf32> -> vector<8x8xf32>
    %c0_86 = arith.constant 0 : index
    %c0_87 = arith.constant 0 : index
    %169 = vector.load %arg10[%c0_86, %c0_87] : memref<8x32xf32, #tpu.memory_space<vmem>>, vector<8x32xf32>
    %170 = arith.truncf %168 : vector<8x8xf32> to vector<8x8xbf16>
    %171 = arith.index_cast %c3_i32 : i32 to index
    %c0_88 = arith.constant 0 : index
    %c0_89 = arith.constant 0 : index
    %172 = vector.load %arg7[%171, %c0_88, %c0_89] : memref<4x8x32xbf16, #tpu.memory_space<vmem>>, vector<1x8x32xbf16>
    %173 = vector.shape_cast %172 : vector<1x8x32xbf16> to vector<8x32xbf16>
    %cst_90 = arith.constant dense<0.000000e+00> : vector<8x32xf32>
    %174 = tpu.matmul %170, %173, %cst_90 {dimension_numbers = #tpu.dot_dimension_numbers<[1], [0], [0], [1], [0, 0, 1, 1], [], []>} : vector<8x8xbf16>, vector<8x32xbf16>, vector<8x32xf32> -> vector<8x32xf32>
    %175 = arith.addf %169, %174 : vector<8x32xf32>
    %c0_91 = arith.constant 0 : index
    %c0_92 = arith.constant 0 : index
    %176 = vector.load %arg10[%c0_91, %c0_92] : memref<8x32xf32, #tpu.memory_space<vmem>>, vector<8x32xf32>
    tpu.vector_store %arg10[%c0_91, %c0_92], %175 {strides = array<i32>} : memref<8x32xf32, #tpu.memory_space<vmem>>, vector<8x32xf32>,
    %c4_i32 = arith.constant 4 : i32
    %c0_93 = arith.constant 0 : index
    %c0_94 = arith.constant 0 : index
    %c0_95 = arith.constant 0 : index
    %177 = vector.load %arg1[%c0_93, %c0_94, %c0_95] : memref<1x8x32xf32, #tpu.memory_space<vmem>>, vector<1x8x32xf32>
    %178 = vector.shape_cast %177 : vector<1x8x32xf32> to vector<8x32xf32>
    %c0_96 = arith.constant 0 : index
    %c0_97 = arith.constant 0 : index
    %179 = vector.load %arg10[%c0_96, %c0_97] : memref<8x32xf32, #tpu.memory_space<vmem>>, vector<8x32xf32>
    %180 = arith.addf %178, %179 : vector<8x32xf32>
    %c0_98 = arith.constant 0 : index
    %c0_99 = arith.constant 0 : index
    %181 = vector.load %arg8[%c0_98, %c0_99] : memref<1x32xf32, #tpu.memory_space<vmem>>, vector<1x32xf32>
    %182 = vector.shape_cast %181 : vector<1x32xf32> to vector<32xf32>
    %183 = vector.shape_cast %182 : vector<32xf32> to vector<1x32xf32>
    %184 = vector.broadcast %183 : vector<1x32xf32> to vector<8x32xf32>
    %185 = arith.addf %180, %184 : vector<8x32xf32>
    %c0_100 = arith.constant 0 : index
    %c0_101 = arith.constant 0 : index
    %c0_102 = arith.constant 0 : index
    %186 = vector.load %arg9[%c0_100, %c0_101, %c0_102] : memref<1x8x32xf32, #tpu.memory_space<vmem>>, vector<1x8x32xf32>
    %187 = vector.shape_cast %186 : vector<1x8x32xf32> to vector<8x32xf32>
    %188 = vector.shape_cast %185 : vector<8x32xf32> to vector<1x8x32xf32>
    tpu.vector_store %arg9[%c0_100, %c0_101, %c0_102], %188 {strides = array<i32>} : memref<1x8x32xf32, #tpu.memory_space<vmem>>, vector<1x8x32xf32>,
    return
  }
  func.func @transform_0(%arg0: i32) -> (i32, i32, i32) {
    %c0_i32 = arith.constant 0 : i32
    %c0_i32_0 = arith.constant 0 : i32
    %c0_i32_1 = arith.constant 0 : i32
    return %arg0, %c0_i32, %c0_i32_0 : i32, i32, i32
  }
  func.func @transform_1(%arg0: i32) -> (i32, i32) {
    %c0_i32 = arith.constant 0 : i32
    %c0_i32_0 = arith.constant 0 : i32
    %c0_i32_1 = arith.constant 0 : i32
    return %c0_i32, %c0_i32_0 : i32, i32
  }
  func.func @transform_2(%arg0: i32) -> (i32, i32) {
    %c0_i32 = arith.constant 0 : i32
    %c0_i32_0 = arith.constant 0 : i32
    %c0_i32_1 = arith.constant 0 : i32
    return %c0_i32, %c0_i32_0 : i32, i32
  }
  func.func @transform_3(%arg0: i32) -> (i32, i32, i32) {
    %c0_i32 = arith.constant 0 : i32
    %c0_i32_0 = arith.constant 0 : i32
    %c0_i32_1 = arith.constant 0 : i32
    %c0_i32_2 = arith.constant 0 : i32
    return %c0_i32, %c0_i32_0, %c0_i32_1 : i32, i32, i32
  }
  func.func @transform_4(%arg0: i32) -> (i32, i32, i32) {
    %c0_i32 = arith.constant 0 : i32
    %c0_i32_0 = arith.constant 0 : i32
    %c0_i32_1 = arith.constant 0 : i32
    %c0_i32_2 = arith.constant 0 : i32
    return %c0_i32, %c0_i32_0, %c0_i32_1 : i32, i32, i32
  }
  func.func @transform_5(%arg0: i32) -> (i32, i32, i32) {
    %c0_i32 = arith.constant 0 : i32
    %c0_i32_0 = arith.constant 0 : i32
    %c0_i32_1 = arith.constant 0 : i32
    %c0_i32_2 = arith.constant 0 : i32
    return %c0_i32, %c0_i32_0, %c0_i32_1 : i32, i32, i32
  }
  func.func @transform_6(%arg0: i32) -> (i32, i32, i32) {
    %c0_i32 = arith.constant 0 : i32
    %c0_i32_0 = arith.constant 0 : i32
    %c0_i32_1 = arith.constant 0 : i32
    %c0_i32_2 = arith.constant 0 : i32
    return %c0_i32, %c0_i32_0, %c0_i32_1 : i32, i32, i32
  }
  func.func @transform_7(%arg0: i32) -> (i32, i32) {
    %c0_i32 = arith.constant 0 : i32
    %c0_i32_0 = arith.constant 0 : i32
    %c0_i32_1 = arith.constant 0 : i32
    return %c0_i32, %c0_i32_0 : i32, i32
  }
  func.func @transform_8(%arg0: i32) -> (i32, i32, i32) {
    %c0_i32 = arith.constant 0 : i32
    %c0_i32_0 = arith.constant 0 : i32
    %c0_i32_1 = arith.constant 0 : i32
    return %arg0, %c0_i32, %c0_i32_0 : i32, i32, i32
  }
}

</mosaic_0001>

<llo_original>
// kernel: tpu_custom_call.1
$region0: #{tpu_custom_call.1}
  #allocation0 [shape = 'u32[]', space=smem, size = 0x4, offset = 0x4, fixed_abs, tag = 'smem constant byte address 0x4 - core index']
  #allocation1 [shape = 'u32[144,128]{1,0:T(1,128)}', space=vmem, size = 0x12000, scoped, tag = 'internal scratch']
  %s0 = inlined_call_operand.hbm [shape: f32[8,128], index: 0, kind: input, shape index: {}]
  %s1 = inlined_call_operand.hbm [shape: f32[8,128], index: 1, kind: output, shape index: {}]
  %s2 = sld [smem:[#allocation0]]
  $region18: #{tpu_custom_call.1} parent=0
    _
  %s4 = ssub.s32 1, %s2
  %s5 = scalar_select 0, %s4, %s2
  $region1: #{tpu_custom_call.1} parent=0
    #allocation2 [shape = 'u8[4096]{0}', space=vmem, size = 0x1000, scoped, tag = 'input window, operand 0, single buffered']
    #allocation3 [shape = 's32[1]{0}', space=sflag, size = 0x4, scoped, tag = 'scoped memory for tpu_custom_call.1']
    #allocation4 [shape = 's32[1]{0}', space=sflag, size = 0x4, scoped, tag = 'scoped memory for tpu_custom_call.1']
    #allocation5 [shape = 'u8[4096]{0}', space=vmem, size = 0x1000, scoped, tag = 'output window, operand 0, single buffered']
    %6 = vsyncpa [#allocation3], 0
    %7 = vsyncpa [#allocation4], 0
    // Predicated region
    $region2: #{tpu_custom_call.1} parent=1 // pred_check
      _
    $region3: #{tpu_custom_call.1} parent=1 // pred_check_branch
      %9 = sbr.rel (0) target = $region5
    $region4: #{tpu_custom_call.1} parent=1 // pred_region
      %s11 = ssub.s32 128, 128
      %12 = vsyncadd [#allocation3], %s11
      %s14 = sshll.u32 [#allocation2], 4
      %s15 = int_to_ptr.vmem [resolvable:$true] %s14
      %17 = dma.hbm_to_vmem [thread:$0]  %s0, 128, %s15, [#allocation3]
    $region5: #{tpu_custom_call.1} parent=1 // pred_fallthru
      _
    // Predicated region
    $region6: #{tpu_custom_call.1} parent=1 // pred_check
      _
    $region7: #{tpu_custom_call.1} parent=1 // pred_check_branch
      %19 = sbr.rel (0) target = $region9
    $region8: #{tpu_custom_call.1} parent=1 // pred_region
      %20 = dma.done [#allocation3], 128
    $region9: #{tpu_custom_call.1} parent=1 // pred_fallthru
      _
    %v21 = vld [vmem:[#allocation2] sm:$0xff]
    %v22 = vadd.f32 %v21, 1.0
    %23 = vst [vmem:[#allocation5] sm:$0xff] %v22
    // Predicated region
    $region10: #{tpu_custom_call.1} parent=1 // pred_check
      _
    $region11: #{tpu_custom_call.1} parent=1 // pred_check_branch
      %25 = sbr.rel (0) target = $region13
    $region12: #{tpu_custom_call.1} parent=1 // pred_region
      %s27 = ssub.s32 128, 128
      %28 = vsyncadd [#allocation4], %s27
      %s30 = sshll.u32 [#allocation5], 4
      %s31 = int_to_ptr.vmem [resolvable:$true] %s30
      %33 = dma.vmem_to_hbm [thread:$0]  %s31, 128, %s1, [#allocation4]
    $region13: #{tpu_custom_call.1} parent=1 // pred_fallthru
      _
    // Predicated region
    $region14: #{tpu_custom_call.1} parent=1 // pred_check
      _
    $region15: #{tpu_custom_call.1} parent=1 // pred_check_branch
      %35 = sbr.rel (0) target = $region17
    $region16: #{tpu_custom_call.1} parent=1 // pred_region
      %36 = dma.done [#allocation4], 128
    $region17: #{tpu_custom_call.1} parent=1 // pred_fallthru
      _
    %37 = vsyncpa [#allocation3], 1
    %38 = vsyncpa [#allocation4], 1

// kernel: tpu_custom_call.1
$region0: #{tpu_custom_call.1}
  #allocation0 [shape = 'u32[]', space=smem, size = 0x4, offset = 0x4, fixed_abs, tag = 'smem constant byte address 0x4 - core index']
  #allocation1 [shape = 'u32[144,128]{1,0:T(1,128)}', space=vmem, size = 0x12000, scoped, tag = 'internal scratch']
  #allocation2 [shape = 'f32[8,32]{1,0:T(8,128)}', space=vmem, size = 0x1000, scoped, tag = 'scratch operand']
  %s0 = inlined_call_operand.vmem [shape: f32[2,8,32], index: 0, kind: input, shape index: {}]
  %s1 = inlined_call_operand.vmem [shape: f32[1,32], index: 1, kind: input, shape index: {}]
  %s2 = inlined_call_operand.vmem [shape: f32[1,32], index: 2, kind: input, shape index: {}]
  %s3 = inlined_call_operand.vmem [shape: bf16[4,32,8], index: 3, kind: input, shape index: {}]
  %s4 = inlined_call_operand.vmem [shape: bf16[4,32,8], index: 4, kind: input, shape index: {}]
  %s5 = inlined_call_operand.vmem [shape: bf16[4,32,8], index: 5, kind: input, shape index: {}]
  %s6 = inlined_call_operand.vmem [shape: bf16[4,8,32], index: 6, kind: input, shape index: {}]
  %s7 = inlined_call_operand.vmem [shape: f32[1,32], index: 7, kind: input, shape index: {}]
  %s8 = inlined_call_operand.hbm [shape: f32[2,8,32], index: 8, kind: output, shape index: {}]
  %s9 = sld [smem:[#allocation0]]
  $region65: #{tpu_custom_call.1} parent=0
    _
  %s11 = ssub.s32 1, %s9
  %s12 = scalar_select 0, %s11, %s9
  $region1: #{tpu_custom_call.1} parent=0
    #allocation3 [shape = 'u8[8192]{0}', space=vmem, size = 0x2000, scoped, tag = 'output window, operand 0']
    #allocation4 [shape = 's32[2]{0}', space=sflag, size = 0x8, scoped, tag = 'scoped memory for tpu_custom_call.1']
    %13 = vsyncpa [#allocation4], 0
    %s14 = scalar_lea.sflag [#allocation4], 1
    %15 = vsyncpa %s14, 0
    loop: start=0, step=1, limit=4
    $region2: #{tpu_custom_call.1} parent=1 // loop_pre_header
      _
    $region3: #{tpu_custom_call.1} parent=1 // loop_header
      %s17 = sphi 0, %s21
      %p18 = scmp.ge.s32.totalorder %s17, 4
      %s27 = sphi 0, %s29
      %s30 = sphi 0, %s27
      %s31 = sphi 0, %s30
      %s47 = sphi 0, %s31
      %s51 = sphi 0, %s51
      %s53 = sphi 0, %s51
      %s54 = sphi 0, %s53
      %s68 = sphi 0, %s54
      %s72 = sphi 0, %s72
      %s74 = sphi 0, %s72
      %s75 = sphi 0, %s74
      %s89 = sphi 0, %s75
      %s93 = sphi 0, %s93
      %s95 = sphi 0, %s93
      %s96 = sphi 0, %s95
      %s110 = sphi 0, %s96
      %s114 = sphi 0, %s114
      %s116 = sphi 0, %s114
      %s117 = sphi 0, %s116
      %s131 = sphi 0, %s117
      %s135 = sphi 0, %s135
      %s137 = sphi 0, %s135
      %s138 = sphi 0, %s137
      %s152 = sphi 0, %s138
      %s156 = sphi 0, %s156
      %s158 = sphi 0, %s156
      %s159 = sphi 0, %s158
      %s173 = sphi 0, %s159
      %s177 = sphi 0, %s177
      %s179 = sphi 0, %s177
      %s180 = sphi 0, %s179
      %s194 = sphi 0, %s180
      %s200 = sphi 0, %s202
      %s203 = sphi 0, %s200
      %s204 = sphi 0, %s203
      %s220 = sphi 0, %s204
    $region4: #{tpu_custom_call.1} parent=1 // loop_header_branch
      %20 = sbr.rel (%p18) target = $region8
    $region5: #{tpu_custom_call.1} parent=1 // loop_body
      %s22 = ssub.s32 %s17, 1
      %s23 = ssub.s32 %s17, 2
      %s24 = sadd.s32 %s17, 1
      %s25 = ssub.s32 %s17, %s24
      %p26 = scmp.eq.s32.totalorder %s25, 0
      %s28 = sadd.s32 %s27, 1
      %s29 = scalar_select %p26, %s27, %s28
      %p32 = pneg %p26
      %p33 = scmp.eq.s32.totalorder %s17, 1
      %p34 = por %p32, %p33
      %p35 = scmp.ne.s32.totalorder %s27, %s30
      %p36 = scmp.eq.s32.totalorder %s17, 0
      %p37 = por %p35, %p36
      %p38 = scmp.ne.s32.totalorder %s27, %s30
      %p39 = scmp.eq.s32.totalorder %s22, 1
      %p40 = por %p38, %p39
      %p41 = scmp.ne.s32.totalorder %s30, %s31
      %p42 = scmp.eq.s32.totalorder %s22, 0
      %p43 = por %p41, %p42
      %p44 = scmp.ne.s32.totalorder %s30, %s31
      %p45 = scmp.eq.s32.totalorder %s23, 1
      %p46 = por %p44, %p45
      %p48 = scmp.ne.s32.totalorder %s31, %s47
      %p49 = scmp.eq.s32.totalorder %s23, 0
      %p50 = por %p48, %p49
      %s52 = sadd.s32 %s51, 1
      %p55 = scmp.eq.s32.totalorder %s17, 1
      %p56 = scmp.ne.s32.totalorder %s51, %s53
      %p57 = scmp.eq.s32.totalorder %s17, 0
      %p58 = por %p56, %p57
      %p59 = scmp.ne.s32.totalorder %s51, %s53
      %p60 = scmp.eq.s32.totalorder %s22, 1
      %p61 = por %p59, %p60
      %p62 = scmp.ne.s32.totalorder %s53, %s54
      %p63 = scmp.eq.s32.totalorder %s22, 0
      %p64 = por %p62, %p63
      %p65 = scmp.ne.s32.totalorder %s53, %s54
      %p66 = scmp.eq.s32.totalorder %s23, 1
      %p67 = por %p65, %p66
      %p69 = scmp.ne.s32.totalorder %s54, %s68
      %p70 = scmp.eq.s32.totalorder %s23, 0
      %p71 = por %p69, %p70
      %s73 = sadd.s32 %s72, 1
      %p76 = scmp.eq.s32.totalorder %s17, 1
      %p77 = scmp.ne.s32.totalorder %s72, %s74
      %p78 = scmp.eq.s32.totalorder %s17, 0
      %p79 = por %p77, %p78
      %p80 = scmp.ne.s32.totalorder %s72, %s74
      %p81 = scmp.eq.s32.totalorder %s22, 1
      %p82 = por %p80, %p81
      %p83 = scmp.ne.s32.totalorder %s74, %s75
      %p84 = scmp.eq.s32.totalorder %s22, 0
      %p85 = por %p83, %p84
      %p86 = scmp.ne.s32.totalorder %s74, %s75
      %p87 = scmp.eq.s32.totalorder %s23, 1
      %p88 = por %p86, %p87
      %p90 = scmp.ne.s32.totalorder %s75, %s89
      %p91 = scmp.eq.s32.totalorder %s23, 0
      %p92 = por %p90, %p91
      %s94 = sadd.s32 %s93, 1
      %p97 = scmp.eq.s32.totalorder %s17, 1
      %p98 = scmp.ne.s32.totalorder %s93, %s95
      %p99 = scmp.eq.s32.totalorder %s17, 0
      %p100 = por %p98, %p99
      %p101 = scmp.ne.s32.totalorder %s93, %s95
      %p102 = scmp.eq.s32.totalorder %s22, 1
      %p103 = por %p101, %p102
      %p104 = scmp.ne.s32.totalorder %s95, %s96
      %p105 = scmp.eq.s32.totalorder %s22, 0
      %p106 = por %p104, %p105
      %p107 = scmp.ne.s32.totalorder %s95, %s96
      %p108 = scmp.eq.s32.totalorder %s23, 1
      %p109 = por %p107, %p108
      %p111 = scmp.ne.s32.totalorder %s96, %s110
      %p112 = scmp.eq.s32.totalorder %s23, 0
      %p113 = por %p111, %p112
      %s115 = sadd.s32 %s114, 1
      %p118 = scmp.eq.s32.totalorder %s17, 1
      %p119 = scmp.ne.s32.totalorder %s114, %s116
      %p120 = scmp.eq.s32.totalorder %s17, 0
      %p121 = por %p119, %p120
      %p122 = scmp.ne.s32.totalorder %s114, %s116
      %p123 = scmp.eq.s32.totalorder %s22, 1
      %p124 = por %p122, %p123
      %p125 = scmp.ne.s32.totalorder %s116, %s117
      %p126 = scmp.eq.s32.totalorder %s22, 0
      %p127 = por %p125, %p126
      %p128 = scmp.ne.s32.totalorder %s116, %s117
      %p129 = scmp.eq.s32.totalorder %s23, 1
      %p130 = por %p128, %p129
      %p132 = scmp.ne.s32.totalorder %s117, %s131
      %p133 = scmp.eq.s32.totalorder %s23, 0
      %p134 = por %p132, %p133
      %s136 = sadd.s32 %s135, 1
      %p139 = scmp.eq.s32.totalorder %s17, 1
      %p140 = scmp.ne.s32.totalorder %s135, %s137
      %p141 = scmp.eq.s32.totalorder %s17, 0
      %p142 = por %p140, %p141
      %p143 = scmp.ne.s32.totalorder %s135, %s137
      %p144 = scmp.eq.s32.totalorder %s22, 1
      %p145 = por %p143, %p144
      %p146 = scmp.ne.s32.totalorder %s137, %s138
      %p147 = scmp.eq.s32.totalorder %s22, 0
      %p148 = por %p146, %p147
      %p149 = scmp.ne.s32.totalorder %s137, %s138
      %p150 = scmp.eq.s32.totalorder %s23, 1
      %p151 = por %p149, %p150
      %p153 = scmp.ne.s32.totalorder %s138, %s152
      %p154 = scmp.eq.s32.totalorder %s23, 0
      %p155 = por %p153, %p154
      %s157 = sadd.s32 %s156, 1
      %p160 = scmp.eq.s32.totalorder %s17, 1
      %p161 = scmp.ne.s32.totalorder %s156, %s158
      %p162 = scmp.eq.s32.totalorder %s17, 0
      %p163 = por %p161, %p162
      %p164 = scmp.ne.s32.totalorder %s156, %s158
      %p165 = scmp.eq.s32.totalorder %s22, 1
      %p166 = por %p164, %p165
      %p167 = scmp.ne.s32.totalorder %s158, %s159
      %p168 = scmp.eq.s32.totalorder %s22, 0
      %p169 = por %p167, %p168
      %p170 = scmp.ne.s32.totalorder %s158, %s159
      %p171 = scmp.eq.s32.totalorder %s23, 1
      %p172 = por %p170, %p171
      %p174 = scmp.ne.s32.totalorder %s159, %s173
      %p175 = scmp.eq.s32.totalorder %s23, 0
      %p176 = por %p174, %p175
      %s178 = sadd.s32 %s177, 1
      %p181 = scmp.eq.s32.totalorder %s17, 1
      %p182 = scmp.ne.s32.totalorder %s177, %s179
      %p183 = scmp.eq.s32.totalorder %s17, 0
      %p184 = por %p182, %p183
      %p185 = scmp.ne.s32.totalorder %s177, %s179
      %p186 = scmp.eq.s32.totalorder %s22, 1
      %p187 = por %p185, %p186
      %p188 = scmp.ne.s32.totalorder %s179, %s180
      %p189 = scmp.eq.s32.totalorder %s22, 0
      %p190 = por %p188, %p189
      %p191 = scmp.ne.s32.totalorder %s179, %s180
      %p192 = scmp.eq.s32.totalorder %s23, 1
      %p193 = por %p191, %p192
      %p195 = scmp.ne.s32.totalorder %s180, %s194
      %p196 = scmp.eq.s32.totalorder %s23, 0
      %p197 = por %p195, %p196
      %s198 = ssub.s32 %s17, %s24
      %p199 = scmp.eq.s32.totalorder %s198, 0
      %s201 = sadd.s32 %s200, 1
      %s202 = scalar_select %p199, %s200, %s201
      %p205 = pneg %p199
      %p206 = scmp.eq.s32.totalorder %s17, 1
      %p207 = por %p205, %p206
      %p208 = scmp.ne.s32.totalorder %s200, %s203
      %p209 = scmp.eq.s32.totalorder %s17, 0
      %p210 = por %p208, %p209
      %p211 = scmp.ne.s32.totalorder %s200, %s203
      %p212 = scmp.eq.s32.totalorder %s22, 1
      %p213 = por %p211, %p212
      %p214 = scmp.ne.s32.totalorder %s203, %s204
      %p215 = scmp.eq.s32.totalorder %s22, 0
      %p216 = por %p214, %p215
      %p217 = scmp.ne.s32.totalorder %s203, %s204
      %p218 = scmp.eq.s32.totalorder %s23, 1
      %p219 = por %p217, %p218
      %p221 = scmp.ne.s32.totalorder %s204, %s220
      %p222 = scmp.eq.s32.totalorder %s23, 0
      %p223 = por %p221, %p222
      %p224 = scmp.le.s32.totalorder 1, %s17
      %p225 = scmp.lt.s32.totalorder %s17, 3
      %p226 = pnand %p224, %p225
      %p227 = pneg %p226
      // Predicated region
      $region9: #{tpu_custom_call.1} parent=5 // pred_check
        _
      $region10: #{tpu_custom_call.1} parent=5 // pred_check_branch
        %229 = sbr.rel (%p226) target = $region12
      $region11: #{tpu_custom_call.1} parent=5 // pred_region
        %s230 = ssub.s32 %s17, 1
        // Predicated region
        $region13: #{tpu_custom_call.1} parent=11 // pred_check
          %p231 = pneg %p64
        $region14: #{tpu_custom_call.1} parent=11 // pred_check_branch
          %233 = sbr.rel (%p231) target = $region16
        $region15: #{tpu_custom_call.1} parent=11 // pred_region
          _
        $region16: #{tpu_custom_call.1} parent=11 // pred_fallthru
          _
        // Predicated region
        $region17: #{tpu_custom_call.1} parent=11 // pred_check
          %p234 = pneg %p85
        $region18: #{tpu_custom_call.1} parent=11 // pred_check_branch
          %236 = sbr.rel (%p234) target = $region20
        $region19: #{tpu_custom_call.1} parent=11 // pred_region
          _
        $region20: #{tpu_custom_call.1} parent=11 // pred_fallthru
          _
        // Predicated region
        $region21: #{tpu_custom_call.1} parent=11 // pred_check
          %p237 = pneg %p106
        $region22: #{tpu_custom_call.1} parent=11 // pred_check_branch
          %239 = sbr.rel (%p237) target = $region24
        $region23: #{tpu_custom_call.1} parent=11 // pred_region
          _
        $region24: #{tpu_custom_call.1} parent=11 // pred_fallthru
          _
        // Predicated region
        $region25: #{tpu_custom_call.1} parent=11 // pred_check
          %p240 = pneg %p127
        $region26: #{tpu_custom_call.1} parent=11 // pred_check_branch
          %242 = sbr.rel (%p240) target = $region28
        $region27: #{tpu_custom_call.1} parent=11 // pred_region
          _
        $region28: #{tpu_custom_call.1} parent=11 // pred_fallthru
          _
        // Predicated region
        $region29: #{tpu_custom_call.1} parent=11 // pred_check
          %p243 = pneg %p148
        $region30: #{tpu_custom_call.1} parent=11 // pred_check_branch
          %245 = sbr.rel (%p243) target = $region32
        $region31: #{tpu_custom_call.1} parent=11 // pred_region
          _
        $region32: #{tpu_custom_call.1} parent=11 // pred_fallthru
          _
        // Predicated region
        $region33: #{tpu_custom_call.1} parent=11 // pred_check
          %p246 = pneg %p169
        $region34: #{tpu_custom_call.1} parent=11 // pred_check_branch
          %248 = sbr.rel (%p246) target = $region36
        $region35: #{tpu_custom_call.1} parent=11 // pred_region
          _
        $region36: #{tpu_custom_call.1} parent=11 // pred_fallthru
          _
        // Predicated region
        $region37: #{tpu_custom_call.1} parent=11 // pred_check
          %p249 = pneg %p190
        $region38: #{tpu_custom_call.1} parent=11 // pred_check_branch
          %251 = sbr.rel (%p249) target = $region40
        $region39: #{tpu_custom_call.1} parent=11 // pred_region
          _
        $region40: #{tpu_custom_call.1} parent=11 // pred_fallthru
          _
      $region12: #{tpu_custom_call.1} parent=5 // pred_fallthru
        _
      %p252 = scmp.lt.s32.totalorder %s17, 2
      // Predicated region
      $region41: #{tpu_custom_call.1} parent=5 // pred_check
        %p253 = pneg %p252
      $region42: #{tpu_custom_call.1} parent=5 // pred_check_branch
        %255 = sbr.rel (%p253) target = $region44
      $region43: #{tpu_custom_call.1} parent=5 // pred_region
        // Predicated region
        $region45: #{tpu_custom_call.1} parent=43 // pred_check
          %p256 = pneg %p37
        $region46: #{tpu_custom_call.1} parent=43 // pred_check_branch
          %258 = sbr.rel (%p256) target = $region48
        $region47: #{tpu_custom_call.1} parent=43 // pred_region
          %p259 = scmp.lt.s32.totalorder %s17, 1
          %s260 = scalar_select %p259, %s17, 1
          %s261 = smul.addr %s260, 8
          %s262 = scalar_lea.vmem %s0, %s261
        $region48: #{tpu_custom_call.1} parent=43 // pred_fallthru
          _
      $region44: #{tpu_custom_call.1} parent=5 // pred_fallthru
        _
      %p263 = scmp.le.s32.totalorder 1, %s17
      %p264 = scmp.lt.s32.totalorder %s17, 3
      %p265 = pnand %p263, %p264
      %p266 = pneg %p265
      // Predicated region
      $region49: #{tpu_custom_call.1} parent=5 // pred_check
        _
      $region50: #{tpu_custom_call.1} parent=5 // pred_check_branch
        %268 = sbr.rel (%p265) target = $region52
      $region51: #{tpu_custom_call.1} parent=5 // pred_region
        %s269 = ssub.s32 %s17, 1
        %p270 = scmp.lt.s32.totalorder %s22, 1
        %s271 = scalar_select %p270, %s22, 1
        %s272 = smul.addr %s271, 8
        %s273 = scalar_lea.vmem %s0, %s272
        %p274 = pneg %p43
        %p275 = pneg %p40
        %p276 = pneg %p64
        %p277 = pneg %p61
        %p278 = pneg %p85
        %p279 = pneg %p82
        %p280 = pneg %p106
        %p281 = pneg %p103
        %p282 = pneg %p127
        %p283 = pneg %p124
        %p284 = pneg %p148
        %p285 = pneg %p145
        %p286 = pneg %p169
        %p287 = pneg %p166
        %p288 = pneg %p190
        %p289 = pneg %p187
        %p290 = pneg %p216
        %p291 = pneg %p213
        %s292 = sand.u32 %s203, 1
        %s293 = scalar_lea.sflag [#allocation4], %s292
        %s294 = sand.u32 %s203, 1
        %s295 = smul.addr %s294, 8
        %s296 = scalar_lea.vmem [#allocation3], %s295
        %p297 = scmp.lt.s32.totalorder %s22, 1
        %s298 = scalar_select %p297, %s22, 1
        %s299 = smul.addr %s298, 8
        %s300 = scalar_lea.vmem %s0, %s299
        %v302 = vld [vmem:[%s300] sm:$0xff]
        %v303 = vld [vmem:[%s1] sm:$0x1]
        %v304 = vld [vmem:[%s2] sm:$0x1]
        %vm305 = vcmask 261120
        %v306 = vsel %vm305, %v302, 0.0
        %307 = vadd.xlane.f32.xlu0 %v306
        %v308 = vpop.xlane.xlu0 %307
        %v309 = vrcp.pop 32.0
        %v310 = vmul.f32 %v308, %v309
        %v311 = vsub.f32 %v302, %v310
        %v312 = vmul.f32 %v311, %v311
        %v313 = vsel %vm305, %v312, 0.0
        %314 = vadd.xlane.f32.xlu0 %v313
        %v315 = vpop.xlane.xlu0 %314
        %v316 = vmul.f32 %v315, %v309
        %v317 = vadd.f32 %v316, 1e-05
        %v318 = vrsqrt.pop %v317
        %v319 = vmul.f32 %v311, %v318
        %v321 = vlaneseq
        %v322 = vshrl.u32 %v321, 7
        %v323 = vsub.s32 0, %v322
        %v324 = vrot.slane %v303, %v323
        %v326 = vmul.f32 %v319, %v324
        %v328 = vlaneseq
        %v329 = vshrl.u32 %v328, 7
        %v330 = vsub.s32 0, %v329
        %v331 = vrot.slane %v304, %v330
        %v333 = vadd.f32 %v326, %v331
        %v334 = vpack.c.bf16 %v333, %v333
        %335 = vst.msk [vmem:[#allocation2] sm:$0xff] %vm305, 0.0
        %v336 = vld [vmem:[%s3] sm:$0xf]
        %v337 = vld [vmem:[%s3 + $0x4] sm:$0xf]
        %v338 = vld [vmem:[%s3 + $0x8] sm:$0xf]
        %v339 = vld [vmem:[%s3 + $0xc] sm:$0xf]
        %v344 = vunpack.c.l.b16 %v336
        %v345 = vunpack.c.l.b16 %v337
        %v346 = vunpack.c.l.b16 %v338
        %v347 = vunpack.c.l.b16 %v339
        %v348 = vpack.c.b16 %v345, %v344
        %v349 = vpack.c.b16 %v347, %v346
        %v353 = vsel %vm305, %v334, 0
        %355 = vmatprep.subr.bf16.mxu0 0
        %356 = vmatpush1.bf16.msra.mxu0 %v348
        %357 = vmatprep.subr.bf16.mxu0 0
        %358 = vmatpush1.bf16.msra.mxu0 %v349
        %359 = vmatprep.subr.bf16.mxu0 0
        %360 = vmatpush1.bf16.msra.mxu0 0
        %361 = vmatprep.subr.bf16.mxu0 0
        %362 = vmatpush1.bf16.msra.mxu0 0
        %363 = vmatprep.subr.bf16.mxu0 0
        %364 = vmatpush1.bf16.msra.mxu0 0
        %365 = vmatprep.subr.bf16.mxu0 0
        %366 = vmatpush1.bf16.msra.mxu0 0
        %367 = vmatprep.subr.bf16.mxu0 0
        %368 = vmatpush1.bf16.msra.mxu0 0
        %369 = vmatprep.subr.bf16.mxu0 0
        %370 = vmatpush1.bf16.msra.mxu0 0
        %371 = vmatprep.subr.bf16.mxu0 0
        %372 = vmatpush1.bf16.msra.mxu0 0
        %373 = vmatprep.subr.bf16.mxu0 0
        %374 = vmatpush1.bf16.msra.mxu0 0
        %375 = vmatprep.subr.bf16.mxu0 0
        %376 = vmatpush1.bf16.msra.mxu0 0
        %377 = vmatprep.subr.bf16.mxu0 0
        %378 = vmatpush1.bf16.msra.mxu0 0
        %379 = vmatprep.subr.bf16.mxu0 0
        %380 = vmatpush1.bf16.msra.mxu0 0
        %381 = vmatprep.subr.bf16.mxu0 0
        %382 = vmatpush1.bf16.msra.mxu0 0
        %383 = vmatprep.subr.bf16.mxu0 0
        %384 = vmatpush1.bf16.msra.mxu0 0
        %385 = vmatprep.subr.bf16.mxu0 0
        %386 = vmatpush1.bf16.msra.mxu0 0
        %387 = vmatprep.mubr.bf16.mxu0 0
        %388 = vmatmul.mubr.bf16.gmra.mrb[0].mxu0 %v353
        %v389 = vpop.f32.mrb[0].mxu0
        %v390 = vadd.f32 0.0, %v389
        %v391 = vpop.f32.mrb[0].mxu0
        %v392 = vpop.f32.mrb[0].mxu0
        %v393 = vpop.f32.mrb[0].mxu0
        %394 = vdwg.mxu0
        %v395 = vpack.c.bf16 %v390, %v390
        %v396 = vld [vmem:[%s4] sm:$0xf]
        %v397 = vld [vmem:[%s4 + $0x4] sm:$0xf]
        %v398 = vld [vmem:[%s4 + $0x8] sm:$0xf]
        %v399 = vld [vmem:[%s4 + $0xc] sm:$0xf]
        %v404 = vunpack.c.l.b16 %v396
        %v405 = vunpack.c.l.b16 %v397
        %v406 = vunpack.c.l.b16 %v398
        %v407 = vunpack.c.l.b16 %v399
        %v408 = vpack.c.b16 %v405, %v404
        %v409 = vpack.c.b16 %v407, %v406
        %412 = vmatprep.subr.bf16.mxu0 0
        %413 = vmatpush1.bf16.msra.mxu0 %v408
        %414 = vmatprep.subr.bf16.mxu0 0
        %415 = vmatpush1.bf16.msra.mxu0 %v409
        %416 = vmatprep.subr.bf16.mxu0 0
        %417 = vmatpush1.bf16.msra.mxu0 0
        %418 = vmatprep.subr.bf16.mxu0 0
        %419 = vmatpush1.bf16.msra.mxu0 0
        %420 = vmatprep.subr.bf16.mxu0 0
        %421 = vmatpush1.bf16.msra.mxu0 0
        %422 = vmatprep.subr.bf16.mxu0 0
        %423 = vmatpush1.bf16.msra.mxu0 0
        %424 = vmatprep.subr.bf16.mxu0 0
        %425 = vmatpush1.bf16.msra.mxu0 0
        %426 = vmatprep.subr.bf16.mxu0 0
        %427 = vmatpush1.bf16.msra.mxu0 0
        %428 = vmatprep.subr.bf16.mxu0 0
        %429 = vmatpush1.bf16.msra.mxu0 0
        %430 = vmatprep.subr.bf16.mxu0 0
        %431 = vmatpush1.bf16.msra.mxu0 0
        %432 = vmatprep.subr.bf16.mxu0 0
        %433 = vmatpush1.bf16.msra.mxu0 0
        %434 = vmatprep.subr.bf16.mxu0 0
        %435 = vmatpush1.bf16.msra.mxu0 0
        %436 = vmatprep.subr.bf16.mxu0 0
        %437 = vmatpush1.bf16.msra.mxu0 0
        %438 = vmatprep.subr.bf16.mxu0 0
        %439 = vmatpush1.bf16.msra.mxu0 0
        %440 = vmatprep.subr.bf16.mxu0 0
        %441 = vmatpush1.bf16.msra.mxu0 0
        %442 = vmatprep.subr.bf16.mxu0 0
        %443 = vmatpush1.bf16.msra.mxu0 0
        %444 = vmatprep.mubr.bf16.mxu0 0
        %445 = vmatmul.mubr.bf16.gmra.mrb[0].mxu0 %v353
        %v446 = vpop.f32.mrb[0].mxu0
        %v447 = vadd.f32 0.0, %v446
        %v448 = vpop.f32.mrb[0].mxu0
        %v449 = vpop.f32.mrb[0].mxu0
        %v450 = vpop.f32.mrb[0].mxu0
        %451 = vdwg.mxu0
        %v452 = vpack.c.bf16 %v447, %v447
        %v453 = vld [vmem:[%s5] sm:$0xf]
        %v454 = vld [vmem:[%s5 + $0x4] sm:$0xf]
        %v455 = vld [vmem:[%s5 + $0x8] sm:$0xf]
        %v456 = vld [vmem:[%s5 + $0xc] sm:$0xf]
        %v461 = vunpack.c.l.b16 %v453
        %v462 = vunpack.c.l.b16 %v454
        %v463 = vunpack.c.l.b16 %v455
        %v464 = vunpack.c.l.b16 %v456
        %v465 = vpack.c.b16 %v462, %v461
        %v466 = vpack.c.b16 %v464, %v463
        %469 = vmatprep.subr.bf16.mxu0 0
        %470 = vmatpush1.bf16.msra.mxu0 %v465
        %471 = vmatprep.subr.bf16.mxu0 0
        %472 = vmatpush1.bf16.msra.mxu0 %v466
        %473 = vmatprep.subr.bf16.mxu0 0
        %474 = vmatpush1.bf16.msra.mxu0 0
        %475 = vmatprep.subr.bf16.mxu0 0
        %476 = vmatpush1.bf16.msra.mxu0 0
        %477 = vmatprep.subr.bf16.mxu0 0
        %478 = vmatpush1.bf16.msra.mxu0 0
        %479 = vmatprep.subr.bf16.mxu0 0
        %480 = vmatpush1.bf16.msra.mxu0 0
        %481 = vmatprep.subr.bf16.mxu0 0
        %482 = vmatpush1.bf16.msra.mxu0 0
        %483 = vmatprep.subr.bf16.mxu0 0
        %484 = vmatpush1.bf16.msra.mxu0 0
        %485 = vmatprep.subr.bf16.mxu0 0
        %486 = vmatpush1.bf16.msra.mxu0 0
        %487 = vmatprep.subr.bf16.mxu0 0
        %488 = vmatpush1.bf16.msra.mxu0 0
        %489 = vmatprep.subr.bf16.mxu0 0
        %490 = vmatpush1.bf16.msra.mxu0 0
        %491 = vmatprep.subr.bf16.mxu0 0
        %492 = vmatpush1.bf16.msra.mxu0 0
        %493 = vmatprep.subr.bf16.mxu0 0
        %494 = vmatpush1.bf16.msra.mxu0 0
        %495 = vmatprep.subr.bf16.mxu0 0
        %496 = vmatpush1.bf16.msra.mxu0 0
        %497 = vmatprep.subr.bf16.mxu0 0
        %498 = vmatpush1.bf16.msra.mxu0 0
        %499 = vmatprep.subr.bf16.mxu0 0
        %500 = vmatpush1.bf16.msra.mxu0 0
        %501 = vmatprep.mubr.bf16.mxu0 0
        %502 = vmatmul.mubr.bf16.gmra.mrb[0].mxu0 %v353
        %v503 = vpop.f32.mrb[0].mxu0
        %v504 = vadd.f32 0.0, %v503
        %v505 = vpop.f32.mrb[0].mxu0
        %v506 = vpop.f32.mrb[0].mxu0
        %v507 = vpop.f32.mrb[0].mxu0
        %508 = vdwg.mxu0
        %v509 = vpack.c.bf16 %v504, %v504
        %vm510 = vcmask 64512
        %v512 = vsel %vm510, %v395, 0
        %v515 = vsel %vm510, %v452, 0
        %517 = vmatprep.subr.bf16.mxu0 0
        %518 = vmatpush1.bf16.xpose.msra.mxu0 %v515
        %519 = vmatprep.subr.bf16.mxu0 0
        %520 = vmatpush1.bf16.xpose.msra.mxu0 0
        %521 = vmatprep.subr.bf16.mxu0 0
        %522 = vmatpush1.bf16.xpose.msra.mxu0 0
        %523 = vmatprep.subr.bf16.mxu0 0
        %524 = vmatpush1.bf16.xpose.msra.mxu0 0
        %525 = vmatprep.subr.bf16.mxu0 0
        %526 = vmatpush1.bf16.xpose.msra.mxu0 0
        %527 = vmatprep.subr.bf16.mxu0 0
        %528 = vmatpush1.bf16.xpose.msra.mxu0 0
        %529 = vmatprep.subr.bf16.mxu0 0
        %530 = vmatpush1.bf16.xpose.msra.mxu0 0
        %531 = vmatprep.subr.bf16.mxu0 0
        %532 = vmatpush1.bf16.xpose.msra.mxu0 0
        %533 = vmatprep.subr.bf16.mxu0 0
        %534 = vmatpush1.bf16.xpose.msra.mxu0 0
        %535 = vmatprep.subr.bf16.mxu0 0
        %536 = vmatpush1.bf16.xpose.msra.mxu0 0
        %537 = vmatprep.subr.bf16.mxu0 0
        %538 = vmatpush1.bf16.xpose.msra.mxu0 0
        %539 = vmatprep.subr.bf16.mxu0 0
        %540 = vmatpush1.bf16.xpose.msra.mxu0 0
        %541 = vmatprep.subr.bf16.mxu0 0
        %542 = vmatpush1.bf16.xpose.msra.mxu0 0
        %543 = vmatprep.subr.bf16.mxu0 0
        %544 = vmatpush1.bf16.xpose.msra.mxu0 0
        %545 = vmatprep.subr.bf16.mxu0 0
        %546 = vmatpush1.bf16.xpose.msra.mxu0 0
        %547 = vmatprep.subr.bf16.mxu0 0
        %548 = vmatpush1.bf16.xpose.msra.mxu0 0
        %549 = vmatprep.mubr.bf16.mxu0 0
        %550 = vmatmul.mubr.bf16.gmra.mrb[0].mxu0 %v512
        %v551 = vpop.f32.mrb[0].mxu0
        %v552 = vadd.f32 0.0, %v551
        %v553 = vpop.f32.mrb[0].mxu0
        %v554 = vpop.f32.mrb[0].mxu0
        %v555 = vpop.f32.mrb[0].mxu0
        %556 = vdwg.mxu0
        %v557 = vsel %vm510, %v552, -inf
        %558 = vmax.xlane.f32.xlu0 %v557
        %v559 = vpop.xlane.xlu0 %558
        %v560 = vsub.f32 %v552, %v559
        %v561 = vmul.f32 %v560, 1.442695
        %v562 = vpow.pop %v561
        %v563 = vsel %vm510, %v562, 0.0
        %564 = vadd.xlane.f32.xlu0 %v563
        %v565 = vpop.xlane.xlu0 %564
        %v566 = vrcp.pop %v565
        %v567 = vmul.f32 %v562, %v566
        %v568 = vpack.c.bf16 %v567, %v567
        %v570 = vsel %vm510, %v568, 0
        %vm572 = vcmask 1043456
        %v574 = vsel %vm572, %v509, 0
        %576 = vmatprep.subr.bf16.mxu0 0
        %577 = vmatpush1.bf16.msra.mxu0 %v574
        %578 = vmatprep.subr.bf16.mxu0 0
        %579 = vmatpush1.bf16.msra.mxu0 0
        %580 = vmatprep.subr.bf16.mxu0 0
        %581 = vmatpush1.bf16.msra.mxu0 0
        %582 = vmatprep.subr.bf16.mxu0 0
        %583 = vmatpush1.bf16.msra.mxu0 0
        %584 = vmatprep.subr.bf16.mxu0 0
        %585 = vmatpush1.bf16.msra.mxu0 0
        %586 = vmatprep.subr.bf16.mxu0 0
        %587 = vmatpush1.bf16.msra.mxu0 0
        %588 = vmatprep.subr.bf16.mxu0 0
        %589 = vmatpush1.bf16.msra.mxu0 0
        %590 = vmatprep.subr.bf16.mxu0 0
        %591 = vmatpush1.bf16.msra.mxu0 0
        %592 = vmatprep.subr.bf16.mxu0 0
        %593 = vmatpush1.bf16.msra.mxu0 0
        %594 = vmatprep.subr.bf16.mxu0 0
        %595 = vmatpush1.bf16.msra.mxu0 0
        %596 = vmatprep.subr.bf16.mxu0 0
        %597 = vmatpush1.bf16.msra.mxu0 0
        %598 = vmatprep.subr.bf16.mxu0 0
        %599 = vmatpush1.bf16.msra.mxu0 0
        %600 = vmatprep.subr.bf16.mxu0 0
        %601 = vmatpush1.bf16.msra.mxu0 0
        %602 = vmatprep.subr.bf16.mxu0 0
        %603 = vmatpush1.bf16.msra.mxu0 0
        %604 = vmatprep.subr.bf16.mxu0 0
        %605 = vmatpush1.bf16.msra.mxu0 0
        %606 = vmatprep.subr.bf16.mxu0 0
        %607 = vmatpush1.bf16.msra.mxu0 0
        %608 = vmatprep.mubr.bf16.mxu0 0
        %609 = vmatmul.mubr.bf16.gmra.mrb[0].mxu0 %v570
        %v610 = vpop.f32.mrb[0].mxu0
        %v611 = vadd.f32 0.0, %v610
        %v612 = vpop.f32.mrb[0].mxu0
        %v613 = vpop.f32.mrb[0].mxu0
        %v614 = vpop.f32.mrb[0].mxu0
        %615 = vdwg.mxu0
        %v616 = vld [vmem:[#allocation2] sm:$0xff]
        %v617 = vpack.c.bf16 %v611, %v611
        %v618 = vld [vmem:[%s6] sm:$0xf]
        %v620 = vsel %vm510, %v617, 0
        %v623 = vsel %vm572, %v618, 0
        %625 = vmatprep.subr.bf16.mxu0 0
        %626 = vmatpush1.bf16.msra.mxu0 %v623
        %627 = vmatprep.subr.bf16.mxu0 0
        %628 = vmatpush1.bf16.msra.mxu0 0
        %629 = vmatprep.subr.bf16.mxu0 0
        %630 = vmatpush1.bf16.msra.mxu0 0
        %631 = vmatprep.subr.bf16.mxu0 0
        %632 = vmatpush1.bf16.msra.mxu0 0
        %633 = vmatprep.subr.bf16.mxu0 0
        %634 = vmatpush1.bf16.msra.mxu0 0
        %635 = vmatprep.subr.bf16.mxu0 0
        %636 = vmatpush1.bf16.msra.mxu0 0
        %637 = vmatprep.subr.bf16.mxu0 0
        %638 = vmatpush1.bf16.msra.mxu0 0
        %639 = vmatprep.subr.bf16.mxu0 0
        %640 = vmatpush1.bf16.msra.mxu0 0
        %641 = vmatprep.subr.bf16.mxu0 0
        %642 = vmatpush1.bf16.msra.mxu0 0
        %643 = vmatprep.subr.bf16.mxu0 0
        %644 = vmatpush1.bf16.msra.mxu0 0
        %645 = vmatprep.subr.bf16.mxu0 0
        %646 = vmatpush1.bf16.msra.mxu0 0
        %647 = vmatprep.subr.bf16.mxu0 0
        %648 = vmatpush1.bf16.msra.mxu0 0
        %649 = vmatprep.subr.bf16.mxu0 0
        %650 = vmatpush1.bf16.msra.mxu0 0
        %651 = vmatprep.subr.bf16.mxu0 0
        %652 = vmatpush1.bf16.msra.mxu0 0
        %653 = vmatprep.subr.bf16.mxu0 0
        %654 = vmatpush1.bf16.msra.mxu0 0
        %655 = vmatprep.subr.bf16.mxu0 0
        %656 = vmatpush1.bf16.msra.mxu0 0
        %657 = vmatprep.mubr.bf16.mxu0 0
        %658 = vmatmul.mubr.bf16.gmra.mrb[0].mxu0 %v620
        %v659 = vpop.f32.mrb[0].mxu0
        %v660 = vadd.f32 0.0, %v659
        %v661 = vpop.f32.mrb[0].mxu0
        %v662 = vpop.f32.mrb[0].mxu0
        %v663 = vpop.f32.mrb[0].mxu0
        %664 = vdwg.mxu0
        %v665 = vadd.f32 %v616, %v660
        %666 = vst.msk [vmem:[#allocation2] sm:$0xff] %vm305, %v665
        %s667 = scalar_lea.vmem %s3, 16
        %v668 = vld [vmem:[%s667] sm:$0xf]
        %v669 = vld [vmem:[%s667 + $0x4] sm:$0xf]
        %v670 = vld [vmem:[%s667 + $0x8] sm:$0xf]
        %v671 = vld [vmem:[%s667 + $0xc] sm:$0xf]
        %v676 = vunpack.c.l.b16 %v668
        %v677 = vunpack.c.l.b16 %v669
        %v678 = vunpack.c.l.b16 %v670
        %v679 = vunpack.c.l.b16 %v671
        %v680 = vpack.c.b16 %v677, %v676
        %v681 = vpack.c.b16 %v679, %v678
        %684 = vmatprep.subr.bf16.mxu0 0
        %685 = vmatpush1.bf16.msra.mxu0 %v680
        %686 = vmatprep.subr.bf16.mxu0 0
        %687 = vmatpush1.bf16.msra.mxu0 %v681
        %688 = vmatprep.subr.bf16.mxu0 0
        %689 = vmatpush1.bf16.msra.mxu0 0
        %690 = vmatprep.subr.bf16.mxu0 0
        %691 = vmatpush1.bf16.msra.mxu0 0
        %692 = vmatprep.subr.bf16.mxu0 0
        %693 = vmatpush1.bf16.msra.mxu0 0
        %694 = vmatprep.subr.bf16.mxu0 0
        %695 = vmatpush1.bf16.msra.mxu0 0
        %696 = vmatprep.subr.bf16.mxu0 0
        %697 = vmatpush1.bf16.msra.mxu0 0
        %698 = vmatprep.subr.bf16.mxu0 0
        %699 = vmatpush1.bf16.msra.mxu0 0
        %700 = vmatprep.subr.bf16.mxu0 0
        %701 = vmatpush1.bf16.msra.mxu0 0
        %702 = vmatprep.subr.bf16.mxu0 0
        %703 = vmatpush1.bf16.msra.mxu0 0
        %704 = vmatprep.subr.bf16.mxu0 0
        %705 = vmatpush1.bf16.msra.mxu0 0
        %706 = vmatprep.subr.bf16.mxu0 0
        %707 = vmatpush1.bf16.msra.mxu0 0
        %708 = vmatprep.subr.bf16.mxu0 0
        %709 = vmatpush1.bf16.msra.mxu0 0
        %710 = vmatprep.subr.bf16.mxu0 0
        %711 = vmatpush1.bf16.msra.mxu0 0
        %712 = vmatprep.subr.bf16.mxu0 0
        %713 = vmatpush1.bf16.msra.mxu0 0
        %714 = vmatprep.subr.bf16.mxu0 0
        %715 = vmatpush1.bf16.msra.mxu0 0
        %716 = vmatprep.mubr.bf16.mxu0 0
        %717 = vmatmul.mubr.bf16.gmra.mrb[0].mxu0 %v353
        %v718 = vpop.f32.mrb[0].mxu0
        %v719 = vadd.f32 0.0, %v718
        %v720 = vpop.f32.mrb[0].mxu0
        %v721 = vpop.f32.mrb[0].mxu0
        %v722 = vpop.f32.mrb[0].mxu0
        %723 = vdwg.mxu0
        %v724 = vpack.c.bf16 %v719, %v719
        %s725 = scalar_lea.vmem %s4, 16
        %v726 = vld [vmem:[%s725] sm:$0xf]
        %v727 = vld [vmem:[%s725 + $0x4] sm:$0xf]
        %v728 = vld [vmem:[%s725 + $0x8] sm:$0xf]
        %v729 = vld [vmem:[%s725 + $0xc] sm:$0xf]
        %v734 = vunpack.c.l.b16 %v726
        %v735 = vunpack.c.l.b16 %v727
        %v736 = vunpack.c.l.b16 %v728
        %v737 = vunpack.c.l.b16 %v729
        %v738 = vpack.c.b16 %v735, %v734
        %v739 = vpack.c.b16 %v737, %v736
        %742 = vmatprep.subr.bf16.mxu0 0
        %743 = vmatpush1.bf16.msra.mxu0 %v738
        %744 = vmatprep.subr.bf16.mxu0 0
        %745 = vmatpush1.bf16.msra.mxu0 %v739
        %746 = vmatprep.subr.bf16.mxu0 0
        %747 = vmatpush1.bf16.msra.mxu0 0
        %748 = vmatprep.subr.bf16.mxu0 0
        %749 = vmatpush1.bf16.msra.mxu0 0
        %750 = vmatprep.subr.bf16.mxu0 0
        %751 = vmatpush1.bf16.msra.mxu0 0
        %752 = vmatprep.subr.bf16.mxu0 0
        %753 = vmatpush1.bf16.msra.mxu0 0
        %754 = vmatprep.subr.bf16.mxu0 0
        %755 = vmatpush1.bf16.msra.mxu0 0
        %756 = vmatprep.subr.bf16.mxu0 0
        %757 = vmatpush1.bf16.msra.mxu0 0
        %758 = vmatprep.subr.bf16.mxu0 0
        %759 = vmatpush1.bf16.msra.mxu0 0
        %760 = vmatprep.subr.bf16.mxu0 0
        %761 = vmatpush1.bf16.msra.mxu0 0
        %762 = vmatprep.subr.bf16.mxu0 0
        %763 = vmatpush1.bf16.msra.mxu0 0
        %764 = vmatprep.subr.bf16.mxu0 0
        %765 = vmatpush1.bf16.msra.mxu0 0
        %766 = vmatprep.subr.bf16.mxu0 0
        %767 = vmatpush1.bf16.msra.mxu0 0
        %768 = vmatprep.subr.bf16.mxu0 0
        %769 = vmatpush1.bf16.msra.mxu0 0
        %770 = vmatprep.subr.bf16.mxu0 0
        %771 = vmatpush1.bf16.msra.mxu0 0
        %772 = vmatprep.subr.bf16.mxu0 0
        %773 = vmatpush1.bf16.msra.mxu0 0
        %774 = vmatprep.mubr.bf16.mxu0 0
        %775 = vmatmul.mubr.bf16.gmra.mrb[0].mxu0 %v353
        %v776 = vpop.f32.mrb[0].mxu0
        %v777 = vadd.f32 0.0, %v776
        %v778 = vpop.f32.mrb[0].mxu0
        %v779 = vpop.f32.mrb[0].mxu0
        %v780 = vpop.f32.mrb[0].mxu0
        %781 = vdwg.mxu0
        %v782 = vpack.c.bf16 %v777, %v777
        %s783 = scalar_lea.vmem %s5, 16
        %v784 = vld [vmem:[%s783] sm:$0xf]
        %v785 = vld [vmem:[%s783 + $0x4] sm:$0xf]
        %v786 = vld [vmem:[%s783 + $0x8] sm:$0xf]
        %v787 = vld [vmem:[%s783 + $0xc] sm:$0xf]
        %v792 = vunpack.c.l.b16 %v784
        %v793 = vunpack.c.l.b16 %v785
        %v794 = vunpack.c.l.b16 %v786
        %v795 = vunpack.c.l.b16 %v787
        %v796 = vpack.c.b16 %v793, %v792
        %v797 = vpack.c.b16 %v795, %v794
        %800 = vmatprep.subr.bf16.mxu0 0
        %801 = vmatpush1.bf16.msra.mxu0 %v796
        %802 = vmatprep.subr.bf16.mxu0 0
        %803 = vmatpush1.bf16.msra.mxu0 %v797
        %804 = vmatprep.subr.bf16.mxu0 0
        %805 = vmatpush1.bf16.msra.mxu0 0
        %806 = vmatprep.subr.bf16.mxu0 0
        %807 = vmatpush1.bf16.msra.mxu0 0
        %808 = vmatprep.subr.bf16.mxu0 0
        %809 = vmatpush1.bf16.msra.mxu0 0
        %810 = vmatprep.subr.bf16.mxu0 0
        %811 = vmatpush1.bf16.msra.mxu0 0
        %812 = vmatprep.subr.bf16.mxu0 0
        %813 = vmatpush1.bf16.msra.mxu0 0
        %814 = vmatprep.subr.bf16.mxu0 0
        %815 = vmatpush1.bf16.msra.mxu0 0
        %816 = vmatprep.subr.bf16.mxu0 0
        %817 = vmatpush1.bf16.msra.mxu0 0
        %818 = vmatprep.subr.bf16.mxu0 0
        %819 = vmatpush1.bf16.msra.mxu0 0
        %820 = vmatprep.subr.bf16.mxu0 0
        %821 = vmatpush1.bf16.msra.mxu0 0
        %822 = vmatprep.subr.bf16.mxu0 0
        %823 = vmatpush1.bf16.msra.mxu0 0
        %824 = vmatprep.subr.bf16.mxu0 0
        %825 = vmatpush1.bf16.msra.mxu0 0
        %826 = vmatprep.subr.bf16.mxu0 0
        %827 = vmatpush1.bf16.msra.mxu0 0
        %828 = vmatprep.subr.bf16.mxu0 0
        %829 = vmatpush1.bf16.msra.mxu0 0
        %830 = vmatprep.subr.bf16.mxu0 0
        %831 = vmatpush1.bf16.msra.mxu0 0
        %832 = vmatprep.mubr.bf16.mxu0 0
        %833 = vmatmul.mubr.bf16.gmra.mrb[0].mxu0 %v353
        %v834 = vpop.f32.mrb[0].mxu0
        %v835 = vadd.f32 0.0, %v834
        %v836 = vpop.f32.mrb[0].mxu0
        %v837 = vpop.f32.mrb[0].mxu0
        %v838 = vpop.f32.mrb[0].mxu0
        %839 = vdwg.mxu0
        %v840 = vpack.c.bf16 %v835, %v835
        %v842 = vsel %vm510, %v724, 0
        %v845 = vsel %vm510, %v782, 0
        %847 = vmatprep.subr.bf16.mxu0 0
        %848 = vmatpush1.bf16.xpose.msra.mxu0 %v845
        %849 = vmatprep.subr.bf16.mxu0 0
        %850 = vmatpush1.bf16.xpose.msra.mxu0 0
        %851 = vmatprep.subr.bf16.mxu0 0
        %852 = vmatpush1.bf16.xpose.msra.mxu0 0
        %853 = vmatprep.subr.bf16.mxu0 0
        %854 = vmatpush1.bf16.xpose.msra.mxu0 0
        %855 = vmatprep.subr.bf16.mxu0 0
        %856 = vmatpush1.bf16.xpose.msra.mxu0 0
        %857 = vmatprep.subr.bf16.mxu0 0
        %858 = vmatpush1.bf16.xpose.msra.mxu0 0
        %859 = vmatprep.subr.bf16.mxu0 0
        %860 = vmatpush1.bf16.xpose.msra.mxu0 0
        %861 = vmatprep.subr.bf16.mxu0 0
        %862 = vmatpush1.bf16.xpose.msra.mxu0 0
        %863 = vmatprep.subr.bf16.mxu0 0
        %864 = vmatpush1.bf16.xpose.msra.mxu0 0
        %865 = vmatprep.subr.bf16.mxu0 0
        %866 = vmatpush1.bf16.xpose.msra.mxu0 0
        %867 = vmatprep.subr.bf16.mxu0 0
        %868 = vmatpush1.bf16.xpose.msra.mxu0 0
        %869 = vmatprep.subr.bf16.mxu0 0
        %870 = vmatpush1.bf16.xpose.msra.mxu0 0
        %871 = vmatprep.subr.bf16.mxu0 0
        %872 = vmatpush1.bf16.xpose.msra.mxu0 0
        %873 = vmatprep.subr.bf16.mxu0 0
        %874 = vmatpush1.bf16.xpose.msra.mxu0 0
        %875 = vmatprep.subr.bf16.mxu0 0
        %876 = vmatpush1.bf16.xpose.msra.mxu0 0
        %877 = vmatprep.subr.bf16.mxu0 0
        %878 = vmatpush1.bf16.xpose.msra.mxu0 0
        %879 = vmatprep.mubr.bf16.mxu0 0
        %880 = vmatmul.mubr.bf16.gmra.mrb[0].mxu0 %v842
        %v881 = vpop.f32.mrb[0].mxu0
        %v882 = vadd.f32 0.0, %v881
        %v883 = vpop.f32.mrb[0].mxu0
        %v884 = vpop.f32.mrb[0].mxu0
        %v885 = vpop.f32.mrb[0].mxu0
        %886 = vdwg.mxu0
        %v887 = vsel %vm510, %v882, -inf
        %888 = vmax.xlane.f32.xlu0 %v887
        %v889 = vpop.xlane.xlu0 %888
        %v890 = vsub.f32 %v882, %v889
        %v891 = vmul.f32 %v890, 1.442695
        %v892 = vpow.pop %v891
        %v893 = vsel %vm510, %v892, 0.0
        %894 = vadd.xlane.f32.xlu0 %v893
        %v895 = vpop.xlane.xlu0 %894
        %v896 = vrcp.pop %v895
        %v897 = vmul.f32 %v892, %v896
        %v898 = vpack.c.bf16 %v897, %v897
        %v900 = vsel %vm510, %v898, 0
        %v903 = vsel %vm572, %v840, 0
        %905 = vmatprep.subr.bf16.mxu0 0
        %906 = vmatpush1.bf16.msra.mxu0 %v903
        %907 = vmatprep.subr.bf16.mxu0 0
        %908 = vmatpush1.bf16.msra.mxu0 0
        %909 = vmatprep.subr.bf16.mxu0 0
        %910 = vmatpush1.bf16.msra.mxu0 0
        %911 = vmatprep.subr.bf16.mxu0 0
        %912 = vmatpush1.bf16.msra.mxu0 0
        %913 = vmatprep.subr.bf16.mxu0 0
        %914 = vmatpush1.bf16.msra.mxu0 0
        %915 = vmatprep.subr.bf16.mxu0 0
        %916 = vmatpush1.bf16.msra.mxu0 0
        %917 = vmatprep.subr.bf16.mxu0 0
        %918 = vmatpush1.bf16.msra.mxu0 0
        %919 = vmatprep.subr.bf16.mxu0 0
        %920 = vmatpush1.bf16.msra.mxu0 0
        %921 = vmatprep.subr.bf16.mxu0 0
        %922 = vmatpush1.bf16.msra.mxu0 0
        %923 = vmatprep.subr.bf16.mxu0 0
        %924 = vmatpush1.bf16.msra.mxu0 0
        %925 = vmatprep.subr.bf16.mxu0 0
        %926 = vmatpush1.bf16.msra.mxu0 0
        %927 = vmatprep.subr.bf16.mxu0 0
        %928 = vmatpush1.bf16.msra.mxu0 0
        %929 = vmatprep.subr.bf16.mxu0 0
        %930 = vmatpush1.bf16.msra.mxu0 0
        %931 = vmatprep.subr.bf16.mxu0 0
        %932 = vmatpush1.bf16.msra.mxu0 0
        %933 = vmatprep.subr.bf16.mxu0 0
        %934 = vmatpush1.bf16.msra.mxu0 0
        %935 = vmatprep.subr.bf16.mxu0 0
        %936 = vmatpush1.bf16.msra.mxu0 0
        %937 = vmatprep.mubr.bf16.mxu0 0
        %938 = vmatmul.mubr.bf16.gmra.mrb[0].mxu0 %v900
        %v939 = vpop.f32.mrb[0].mxu0
        %v940 = vadd.f32 0.0, %v939
        %v941 = vpop.f32.mrb[0].mxu0
        %v942 = vpop.f32.mrb[0].mxu0
        %v943 = vpop.f32.mrb[0].mxu0
        %944 = vdwg.mxu0
        %v945 = vld [vmem:[#allocation2] sm:$0xff]
        %v946 = vpack.c.bf16 %v940, %v940
        %s947 = scalar_lea.vmem %s6, 4
        %v948 = vld [vmem:[%s947] sm:$0xf]
        %v950 = vsel %vm510, %v946, 0
        %v953 = vsel %vm572, %v948, 0
        %955 = vmatprep.subr.bf16.mxu0 0
        %956 = vmatpush1.bf16.msra.mxu0 %v953
        %957 = vmatprep.subr.bf16.mxu0 0
        %958 = vmatpush1.bf16.msra.mxu0 0
        %959 = vmatprep.subr.bf16.mxu0 0
        %960 = vmatpush1.bf16.msra.mxu0 0
        %961 = vmatprep.subr.bf16.mxu0 0
        %962 = vmatpush1.bf16.msra.mxu0 0
        %963 = vmatprep.subr.bf16.mxu0 0
        %964 = vmatpush1.bf16.msra.mxu0 0
        %965 = vmatprep.subr.bf16.mxu0 0
        %966 = vmatpush1.bf16.msra.mxu0 0
        %967 = vmatprep.subr.bf16.mxu0 0
        %968 = vmatpush1.bf16.msra.mxu0 0
        %969 = vmatprep.subr.bf16.mxu0 0
        %970 = vmatpush1.bf16.msra.mxu0 0
        %971 = vmatprep.subr.bf16.mxu0 0
        %972 = vmatpush1.bf16.msra.mxu0 0
        %973 = vmatprep.subr.bf16.mxu0 0
        %974 = vmatpush1.bf16.msra.mxu0 0
        %975 = vmatprep.subr.bf16.mxu0 0
        %976 = vmatpush1.bf16.msra.mxu0 0
        %977 = vmatprep.subr.bf16.mxu0 0
        %978 = vmatpush1.bf16.msra.mxu0 0
        %979 = vmatprep.subr.bf16.mxu0 0
        %980 = vmatpush1.bf16.msra.mxu0 0
        %981 = vmatprep.subr.bf16.mxu0 0
        %982 = vmatpush1.bf16.msra.mxu0 0
        %983 = vmatprep.subr.bf16.mxu0 0
        %984 = vmatpush1.bf16.msra.mxu0 0
        %985 = vmatprep.subr.bf16.mxu0 0
        %986 = vmatpush1.bf16.msra.mxu0 0
        %987 = vmatprep.mubr.bf16.mxu0 0
        %988 = vmatmul.mubr.bf16.gmra.mrb[0].mxu0 %v950
        %v989 = vpop.f32.mrb[0].mxu0
        %v990 = vadd.f32 0.0, %v989
        %v991 = vpop.f32.mrb[0].mxu0
        %v992 = vpop.f32.mrb[0].mxu0
        %v993 = vpop.f32.mrb[0].mxu0
        %994 = vdwg.mxu0
        %v995 = vadd.f32 %v945, %v990
        %996 = vst.msk [vmem:[#allocation2] sm:$0xff] %vm305, %v995
        %s997 = scalar_lea.vmem %s3, 32
        %v998 = vld [vmem:[%s997] sm:$0xf]
        %v999 = vld [vmem:[%s997 + $0x4] sm:$0xf]
        %v1000 = vld [vmem:[%s997 + $0x8] sm:$0xf]
        %v1001 = vld [vmem:[%s997 + $0xc] sm:$0xf]
        %v1006 = vunpack.c.l.b16 %v998
        %v1007 = vunpack.c.l.b16 %v999
        %v1008 = vunpack.c.l.b16 %v1000
        %v1009 = vunpack.c.l.b16 %v1001
        %v1010 = vpack.c.b16 %v1007, %v1006
        %v1011 = vpack.c.b16 %v1009, %v1008
        %1014 = vmatprep.subr.bf16.mxu0 0
        %1015 = vmatpush1.bf16.msra.mxu0 %v1010
        %1016 = vmatprep.subr.bf16.mxu0 0
        %1017 = vmatpush1.bf16.msra.mxu0 %v1011
        %1018 = vmatprep.subr.bf16.mxu0 0
        %1019 = vmatpush1.bf16.msra.mxu0 0
        %1020 = vmatprep.subr.bf16.mxu0 0
        %1021 = vmatpush1.bf16.msra.mxu0 0
        %1022 = vmatprep.subr.bf16.mxu0 0
        %1023 = vmatpush1.bf16.msra.mxu0 0
        %1024 = vmatprep.subr.bf16.mxu0 0
        %1025 = vmatpush1.bf16.msra.mxu0 0
        %1026 = vmatprep.subr.bf16.mxu0 0
        %1027 = vmatpush1.bf16.msra.mxu0 0
        %1028 = vmatprep.subr.bf16.mxu0 0
        %1029 = vmatpush1.bf16.msra.mxu0 0
        %1030 = vmatprep.subr.bf16.mxu0 0
        %1031 = vmatpush1.bf16.msra.mxu0 0
        %1032 = vmatprep.subr.bf16.mxu0 0
        %1033 = vmatpush1.bf16.msra.mxu0 0
        %1034 = vmatprep.subr.bf16.mxu0 0
        %1035 = vmatpush1.bf16.msra.mxu0 0
        %1036 = vmatprep.subr.bf16.mxu0 0
        %1037 = vmatpush1.bf16.msra.mxu0 0
        %1038 = vmatprep.subr.bf16.mxu0 0
        %1039 = vmatpush1.bf16.msra.mxu0 0
        %1040 = vmatprep.subr.bf16.mxu0 0
        %1041 = vmatpush1.bf16.msra.mxu0 0
        %1042 = vmatprep.subr.bf16.mxu0 0
        %1043 = vmatpush1.bf16.msra.mxu0 0
        %1044 = vmatprep.subr.bf16.mxu0 0
        %1045 = vmatpush1.bf16.msra.mxu0 0
        %1046 = vmatprep.mubr.bf16.mxu0 0
        %1047 = vmatmul.mubr.bf16.gmra.mrb[0].mxu0 %v353
        %v1048 = vpop.f32.mrb[0].mxu0
        %v1049 = vadd.f32 0.0, %v1048
        %v1050 = vpop.f32.mrb[0].mxu0
        %v1051 = vpop.f32.mrb[0].mxu0
        %v1052 = vpop.f32.mrb[0].mxu0
        %1053 = vdwg.mxu0
        %v1054 = vpack.c.bf16 %v1049, %v1049
        %s1055 = scalar_lea.vmem %s4, 32
        %v1056 = vld [vmem:[%s1055] sm:$0xf]
        %v1057 = vld [vmem:[%s1055 + $0x4] sm:$0xf]
        %v1058 = vld [vmem:[%s1055 + $0x8] sm:$0xf]
        %v1059 = vld [vmem:[%s1055 + $0xc] sm:$0xf]
        %v1064 = vunpack.c.l.b16 %v1056
        %v1065 = vunpack.c.l.b16 %v1057
        %v1066 = vunpack.c.l.b16 %v1058
        %v1067 = vunpack.c.l.b16 %v1059
        %v1068 = vpack.c.b16 %v1065, %v1064
        %v1069 = vpack.c.b16 %v1067, %v1066
        %1072 = vmatprep.subr.bf16.mxu0 0
        %1073 = vmatpush1.bf16.msra.mxu0 %v1068
        %1074 = vmatprep.subr.bf16.mxu0 0
        %1075 = vmatpush1.bf16.msra.mxu0 %v1069
        %1076 = vmatprep.subr.bf16.mxu0 0
        %1077 = vmatpush1.bf16.msra.mxu0 0
        %1078 = vmatprep.subr.bf16.mxu0 0
        %1079 = vmatpush1.bf16.msra.mxu0 0
        %1080 = vmatprep.subr.bf16.mxu0 0
        %1081 = vmatpush1.bf16.msra.mxu0 0
        %1082 = vmatprep.subr.bf16.mxu0 0
        %1083 = vmatpush1.bf16.msra.mxu0 0
        %1084 = vmatprep.subr.bf16.mxu0 0
        %1085 = vmatpush1.bf16.msra.mxu0 0
        %1086 = vmatprep.subr.bf16.mxu0 0
        %1087 = vmatpush1.bf16.msra.mxu0 0
        %1088 = vmatprep.subr.bf16.mxu0 0
        %1089 = vmatpush1.bf16.msra.mxu0 0
        %1090 = vmatprep.subr.bf16.mxu0 0
        %1091 = vmatpush1.bf16.msra.mxu0 0
        %1092 = vmatprep.subr.bf16.mxu0 0
        %1093 = vmatpush1.bf16.msra.mxu0 0
        %1094 = vmatprep.subr.bf16.mxu0 0
        %1095 = vmatpush1.bf16.msra.mxu0 0
        %1096 = vmatprep.subr.bf16.mxu0 0
        %1097 = vmatpush1.bf16.msra.mxu0 0
        %1098 = vmatprep.subr.bf16.mxu0 0
        %1099 = vmatpush1.bf16.msra.mxu0 0
        %1100 = vmatprep.subr.bf16.mxu0 0
        %1101 = vmatpush1.bf16.msra.mxu0 0
        %1102 = vmatprep.subr.bf16.mxu0 0
        %1103 = vmatpush1.bf16.msra.mxu0 0
        %1104 = vmatprep.mubr.bf16.mxu0 0
        %1105 = vmatmul.mubr.bf16.gmra.mrb[0].mxu0 %v353
        %v1106 = vpop.f32.mrb[0].mxu0
        %v1107 = vadd.f32 0.0, %v1106
        %v1108 = vpop.f32.mrb[0].mxu0
        %v1109 = vpop.f32.mrb[0].mxu0
        %v1110 = vpop.f32.mrb[0].mxu0
        %1111 = vdwg.mxu0
        %v1112 = vpack.c.bf16 %v1107, %v1107
        %s1113 = scalar_lea.vmem %s5, 32
        %v1114 = vld [vmem:[%s1113] sm:$0xf]
        %v1115 = vld [vmem:[%s1113 + $0x4] sm:$0xf]
        %v1116 = vld [vmem:[%s1113 + $0x8] sm:$0xf]
        %v1117 = vld [vmem:[%s1113 + $0xc] sm:$0xf]
        %v1122 = vunpack.c.l.b16 %v1114
        %v1123 = vunpack.c.l.b16 %v1115
        %v1124 = vunpack.c.l.b16 %v1116
        %v1125 = vunpack.c.l.b16 %v1117
        %v1126 = vpack.c.b16 %v1123, %v1122
        %v1127 = vpack.c.b16 %v1125, %v1124
        %1130 = vmatprep.subr.bf16.mxu0 0
        %1131 = vmatpush1.bf16.msra.mxu0 %v1126
        %1132 = vmatprep.subr.bf16.mxu0 0
        %1133 = vmatpush1.bf16.msra.mxu0 %v1127
        %1134 = vmatprep.subr.bf16.mxu0 0
        %1135 = vmatpush1.bf16.msra.mxu0 0
        %1136 = vmatprep.subr.bf16.mxu0 0
        %1137 = vmatpush1.bf16.msra.mxu0 0
        %1138 = vmatprep.subr.bf16.mxu0 0
        %1139 = vmatpush1.bf16.msra.mxu0 0
        %1140 = vmatprep.subr.bf16.mxu0 0
        %1141 = vmatpush1.bf16.msra.mxu0 0
        %1142 = vmatprep.subr.bf16.mxu0 0
        %1143 = vmatpush1.bf16.msra.mxu0 0
        %1144 = vmatprep.subr.bf16.mxu0 0
        %1145 = vmatpush1.bf16.msra.mxu0 0
        %1146 = vmatprep.subr.bf16.mxu0 0
        %1147 = vmatpush1.bf16.msra.mxu0 0
        %1148 = vmatprep.subr.bf16.mxu0 0
        %1149 = vmatpush1.bf16.msra.mxu0 0
        %1150 = vmatprep.subr.bf16.mxu0 0
        %1151 = vmatpush1.bf16.msra.mxu0 0
        %1152 = vmatprep.subr.bf16.mxu0 0
        %1153 = vmatpush1.bf16.msra.mxu0 0
        %1154 = vmatprep.subr.bf16.mxu0 0
        %1155 = vmatpush1.bf16.msra.mxu0 0
        %1156 = vmatprep.subr.bf16.mxu0 0
        %1157 = vmatpush1.bf16.msra.mxu0 0
        %1158 = vmatprep.subr.bf16.mxu0 0
        %1159 = vmatpush1.bf16.msra.mxu0 0
        %1160 = vmatprep.subr.bf16.mxu0 0
        %1161 = vmatpush1.bf16.msra.mxu0 0
        %1162 = vmatprep.mubr.bf16.mxu0 0
        %1163 = vmatmul.mubr.bf16.gmra.mrb[0].mxu0 %v353
        %v1164 = vpop.f32.mrb[0].mxu0
        %v1165 = vadd.f32 0.0, %v1164
        %v1166 = vpop.f32.mrb[0].mxu0
        %v1167 = vpop.f32.mrb[0].mxu0
        %v1168 = vpop.f32.mrb[0].mxu0
        %1169 = vdwg.mxu0
        %v1170 = vpack.c.bf16 %v1165, %v1165
        %v1172 = vsel %vm510, %v1054, 0
        %v1175 = vsel %vm510, %v1112, 0
        %1177 = vmatprep.subr.bf16.mxu0 0
        %1178 = vmatpush1.bf16.xpose.msra.mxu0 %v1175
        %1179 = vmatprep.subr.bf16.mxu0 0
        %1180 = vmatpush1.bf16.xpose.msra.mxu0 0
        %1181 = vmatprep.subr.bf16.mxu0 0
        %1182 = vmatpush1.bf16.xpose.msra.mxu0 0
        %1183 = vmatprep.subr.bf16.mxu0 0
        %1184 = vmatpush1.bf16.xpose.msra.mxu0 0
        %1185 = vmatprep.subr.bf16.mxu0 0
        %1186 = vmatpush1.bf16.xpose.msra.mxu0 0
        %1187 = vmatprep.subr.bf16.mxu0 0
        %1188 = vmatpush1.bf16.xpose.msra.mxu0 0
        %1189 = vmatprep.subr.bf16.mxu0 0
        %1190 = vmatpush1.bf16.xpose.msra.mxu0 0
        %1191 = vmatprep.subr.bf16.mxu0 0
        %1192 = vmatpush1.bf16.xpose.msra.mxu0 0
        %1193 = vmatprep.subr.bf16.mxu0 0
        %1194 = vmatpush1.bf16.xpose.msra.mxu0 0
        %1195 = vmatprep.subr.bf16.mxu0 0
        %1196 = vmatpush1.bf16.xpose.msra.mxu0 0
        %1197 = vmatprep.subr.bf16.mxu0 0
        %1198 = vmatpush1.bf16.xpose.msra.mxu0 0
        %1199 = vmatprep.subr.bf16.mxu0 0
        %1200 = vmatpush1.bf16.xpose.msra.mxu0 0
        %1201 = vmatprep.subr.bf16.mxu0 0
        %1202 = vmatpush1.bf16.xpose.msra.mxu0 0
        %1203 = vmatprep.subr.bf16.mxu0 0
        %1204 = vmatpush1.bf16.xpose.msra.mxu0 0
        %1205 = vmatprep.subr.bf16.mxu0 0
        %1206 = vmatpush1.bf16.xpose.msra.mxu0 0
        %1207 = vmatprep.subr.bf16.mxu0 0
        %1208 = vmatpush1.bf16.xpose.msra.mxu0 0
        %1209 = vmatprep.mubr.bf16.mxu0 0
        %1210 = vmatmul.mubr.bf16.gmra.mrb[0].mxu0 %v1172
        %v1211 = vpop.f32.mrb[0].mxu0
        %v1212 = vadd.f32 0.0, %v1211
        %v1213 = vpop.f32.mrb[0].mxu0
        %v1214 = vpop.f32.mrb[0].mxu0
        %v1215 = vpop.f32.mrb[0].mxu0
        %1216 = vdwg.mxu0
        %v1217 = vsel %vm510, %v1212, -inf
        %1218 = vmax.xlane.f32.xlu0 %v1217
        %v1219 = vpop.xlane.xlu0 %1218
        %v1220 = vsub.f32 %v1212, %v1219
        %v1221 = vmul.f32 %v1220, 1.442695
        %v1222 = vpow.pop %v1221
        %v1223 = vsel %vm510, %v1222, 0.0
        %1224 = vadd.xlane.f32.xlu0 %v1223
        %v1225 = vpop.xlane.xlu0 %1224
        %v1226 = vrcp.pop %v1225
        %v1227 = vmul.f32 %v1222, %v1226
        %v1228 = vpack.c.bf16 %v1227, %v1227
        %v1230 = vsel %vm510, %v1228, 0
        %v1233 = vsel %vm572, %v1170, 0
        %1235 = vmatprep.subr.bf16.mxu0 0
        %1236 = vmatpush1.bf16.msra.mxu0 %v1233
        %1237 = vmatprep.subr.bf16.mxu0 0
        %1238 = vmatpush1.bf16.msra.mxu0 0
        %1239 = vmatprep.subr.bf16.mxu0 0
        %1240 = vmatpush1.bf16.msra.mxu0 0
        %1241 = vmatprep.subr.bf16.mxu0 0
        %1242 = vmatpush1.bf16.msra.mxu0 0
        %1243 = vmatprep.subr.bf16.mxu0 0
        %1244 = vmatpush1.bf16.msra.mxu0 0
        %1245 = vmatprep.subr.bf16.mxu0 0
        %1246 = vmatpush1.bf16.msra.mxu0 0
        %1247 = vmatprep.subr.bf16.mxu0 0
        %1248 = vmatpush1.bf16.msra.mxu0 0
        %1249 = vmatprep.subr.bf16.mxu0 0
        %1250 = vmatpush1.bf16.msra.mxu0 0
        %1251 = vmatprep.subr.bf16.mxu0 0
        %1252 = vmatpush1.bf16.msra.mxu0 0
        %1253 = vmatprep.subr.bf16.mxu0 0
        %1254 = vmatpush1.bf16.msra.mxu0 0
        %1255 = vmatprep.subr.bf16.mxu0 0
        %1256 = vmatpush1.bf16.msra.mxu0 0
        %1257 = vmatprep.subr.bf16.mxu0 0
        %1258 = vmatpush1.bf16.msra.mxu0 0
        %1259 = vmatprep.subr.bf16.mxu0 0
        %1260 = vmatpush1.bf16.msra.mxu0 0
        %1261 = vmatprep.subr.bf16.mxu0 0
        %1262 = vmatpush1.bf16.msra.mxu0 0
        %1263 = vmatprep.subr.bf16.mxu0 0
        %1264 = vmatpush1.bf16.msra.mxu0 0
        %1265 = vmatprep.subr.bf16.mxu0 0
        %1266 = vmatpush1.bf16.msra.mxu0 0
        %1267 = vmatprep.mubr.bf16.mxu0 0
        %1268 = vmatmul.mubr.bf16.gmra.mrb[0].mxu0 %v1230
        %v1269 = vpop.f32.mrb[0].mxu0
        %v1270 = vadd.f32 0.0, %v1269
        %v1271 = vpop.f32.mrb[0].mxu0
        %v1272 = vpop.f32.mrb[0].mxu0
        %v1273 = vpop.f32.mrb[0].mxu0
        %1274 = vdwg.mxu0
        %v1275 = vld [vmem:[#allocation2] sm:$0xff]
        %v1276 = vpack.c.bf16 %v1270, %v1270
        %s1277 = scalar_lea.vmem %s6, 8
        %v1278 = vld [vmem:[%s1277] sm:$0xf]
        %v1280 = vsel %vm510, %v1276, 0
        %v1283 = vsel %vm572, %v1278, 0
        %1285 = vmatprep.subr.bf16.mxu0 0
        %1286 = vmatpush1.bf16.msra.mxu0 %v1283
        %1287 = vmatprep.subr.bf16.mxu0 0
        %1288 = vmatpush1.bf16.msra.mxu0 0
        %1289 = vmatprep.subr.bf16.mxu0 0
        %1290 = vmatpush1.bf16.msra.mxu0 0
        %1291 = vmatprep.subr.bf16.mxu0 0
        %1292 = vmatpush1.bf16.msra.mxu0 0
        %1293 = vmatprep.subr.bf16.mxu0 0
        %1294 = vmatpush1.bf16.msra.mxu0 0
        %1295 = vmatprep.subr.bf16.mxu0 0
        %1296 = vmatpush1.bf16.msra.mxu0 0
        %1297 = vmatprep.subr.bf16.mxu0 0
        %1298 = vmatpush1.bf16.msra.mxu0 0
        %1299 = vmatprep.subr.bf16.mxu0 0
        %1300 = vmatpush1.bf16.msra.mxu0 0
        %1301 = vmatprep.subr.bf16.mxu0 0
        %1302 = vmatpush1.bf16.msra.mxu0 0
        %1303 = vmatprep.subr.bf16.mxu0 0
        %1304 = vmatpush1.bf16.msra.mxu0 0
        %1305 = vmatprep.subr.bf16.mxu0 0
        %1306 = vmatpush1.bf16.msra.mxu0 0
        %1307 = vmatprep.subr.bf16.mxu0 0
        %1308 = vmatpush1.bf16.msra.mxu0 0
        %1309 = vmatprep.subr.bf16.mxu0 0
        %1310 = vmatpush1.bf16.msra.mxu0 0
        %1311 = vmatprep.subr.bf16.mxu0 0
        %1312 = vmatpush1.bf16.msra.mxu0 0
        %1313 = vmatprep.subr.bf16.mxu0 0
        %1314 = vmatpush1.bf16.msra.mxu0 0
        %1315 = vmatprep.subr.bf16.mxu0 0
        %1316 = vmatpush1.bf16.msra.mxu0 0
        %1317 = vmatprep.mubr.bf16.mxu0 0
        %1318 = vmatmul.mubr.bf16.gmra.mrb[0].mxu0 %v1280
        %v1319 = vpop.f32.mrb[0].mxu0
        %v1320 = vadd.f32 0.0, %v1319
        %v1321 = vpop.f32.mrb[0].mxu0
        %v1322 = vpop.f32.mrb[0].mxu0
        %v1323 = vpop.f32.mrb[0].mxu0
        %1324 = vdwg.mxu0
        %v1325 = vadd.f32 %v1275, %v1320
        %1326 = vst.msk [vmem:[#allocation2] sm:$0xff] %vm305, %v1325
        %s1327 = scalar_lea.vmem %s3, 48
        %v1328 = vld [vmem:[%s1327] sm:$0xf]
        %v1329 = vld [vmem:[%s1327 + $0x4] sm:$0xf]
        %v1330 = vld [vmem:[%s1327 + $0x8] sm:$0xf]
        %v1331 = vld [vmem:[%s1327 + $0xc] sm:$0xf]
        %v1336 = vunpack.c.l.b16 %v1328
        %v1337 = vunpack.c.l.b16 %v1329
        %v1338 = vunpack.c.l.b16 %v1330
        %v1339 = vunpack.c.l.b16 %v1331
        %v1340 = vpack.c.b16 %v1337, %v1336
        %v1341 = vpack.c.b16 %v1339, %v1338
        %1344 = vmatprep.subr.bf16.mxu0 0
        %1345 = vmatpush1.bf16.msra.mxu0 %v1340
        %1346 = vmatprep.subr.bf16.mxu0 0
        %1347 = vmatpush1.bf16.msra.mxu0 %v1341
        %1348 = vmatprep.subr.bf16.mxu0 0
        %1349 = vmatpush1.bf16.msra.mxu0 0
        %1350 = vmatprep.subr.bf16.mxu0 0
        %1351 = vmatpush1.bf16.msra.mxu0 0
        %1352 = vmatprep.subr.bf16.mxu0 0
        %1353 = vmatpush1.bf16.msra.mxu0 0
        %1354 = vmatprep.subr.bf16.mxu0 0
        %1355 = vmatpush1.bf16.msra.mxu0 0
        %1356 = vmatprep.subr.bf16.mxu0 0
        %1357 = vmatpush1.bf16.msra.mxu0 0
        %1358 = vmatprep.subr.bf16.mxu0 0
        %1359 = vmatpush1.bf16.msra.mxu0 0
        %1360 = vmatprep.subr.bf16.mxu0 0
        %1361 = vmatpush1.bf16.msra.mxu0 0
        %1362 = vmatprep.subr.bf16.mxu0 0
        %1363 = vmatpush1.bf16.msra.mxu0 0
        %1364 = vmatprep.subr.bf16.mxu0 0
        %1365 = vmatpush1.bf16.msra.mxu0 0
        %1366 = vmatprep.subr.bf16.mxu0 0
        %1367 = vmatpush1.bf16.msra.mxu0 0
        %1368 = vmatprep.subr.bf16.mxu0 0
        %1369 = vmatpush1.bf16.msra.mxu0 0
        %1370 = vmatprep.subr.bf16.mxu0 0
        %1371 = vmatpush1.bf16.msra.mxu0 0
        %1372 = vmatprep.subr.bf16.mxu0 0
        %1373 = vmatpush1.bf16.msra.mxu0 0
        %1374 = vmatprep.subr.bf16.mxu0 0
        %1375 = vmatpush1.bf16.msra.mxu0 0
        %1376 = vmatprep.mubr.bf16.mxu0 0
        %1377 = vmatmul.mubr.bf16.gmra.mrb[0].mxu0 %v353
        %v1378 = vpop.f32.mrb[0].mxu0
        %v1379 = vadd.f32 0.0, %v1378
        %v1380 = vpop.f32.mrb[0].mxu0
        %v1381 = vpop.f32.mrb[0].mxu0
        %v1382 = vpop.f32.mrb[0].mxu0
        %1383 = vdwg.mxu0
        %v1384 = vpack.c.bf16 %v1379, %v1379
        %s1385 = scalar_lea.vmem %s4, 48
        %v1386 = vld [vmem:[%s1385] sm:$0xf]
        %v1387 = vld [vmem:[%s1385 + $0x4] sm:$0xf]
        %v1388 = vld [vmem:[%s1385 + $0x8] sm:$0xf]
        %v1389 = vld [vmem:[%s1385 + $0xc] sm:$0xf]
        %v1394 = vunpack.c.l.b16 %v1386
        %v1395 = vunpack.c.l.b16 %v1387
        %v1396 = vunpack.c.l.b16 %v1388
        %v1397 = vunpack.c.l.b16 %v1389
        %v1398 = vpack.c.b16 %v1395, %v1394
        %v1399 = vpack.c.b16 %v1397, %v1396
        %1402 = vmatprep.subr.bf16.mxu0 0
        %1403 = vmatpush1.bf16.msra.mxu0 %v1398
        %1404 = vmatprep.subr.bf16.mxu0 0
        %1405 = vmatpush1.bf16.msra.mxu0 %v1399
        %1406 = vmatprep.subr.bf16.mxu0 0
        %1407 = vmatpush1.bf16.msra.mxu0 0
        %1408 = vmatprep.subr.bf16.mxu0 0
        %1409 = vmatpush1.bf16.msra.mxu0 0
        %1410 = vmatprep.subr.bf16.mxu0 0
        %1411 = vmatpush1.bf16.msra.mxu0 0
        %1412 = vmatprep.subr.bf16.mxu0 0
        %1413 = vmatpush1.bf16.msra.mxu0 0
        %1414 = vmatprep.subr.bf16.mxu0 0
        %1415 = vmatpush1.bf16.msra.mxu0 0
        %1416 = vmatprep.subr.bf16.mxu0 0
        %1417 = vmatpush1.bf16.msra.mxu0 0
        %1418 = vmatprep.subr.bf16.mxu0 0
        %1419 = vmatpush1.bf16.msra.mxu0 0
        %1420 = vmatprep.subr.bf16.mxu0 0
        %1421 = vmatpush1.bf16.msra.mxu0 0
        %1422 = vmatprep.subr.bf16.mxu0 0
        %1423 = vmatpush1.bf16.msra.mxu0 0
        %1424 = vmatprep.subr.bf16.mxu0 0
        %1425 = vmatpush1.bf16.msra.mxu0 0
        %1426 = vmatprep.subr.bf16.mxu0 0
        %1427 = vmatpush1.bf16.msra.mxu0 0
        %1428 = vmatprep.subr.bf16.mxu0 0
        %1429 = vmatpush1.bf16.msra.mxu0 0
        %1430 = vmatprep.subr.bf16.mxu0 0
        %1431 = vmatpush1.bf16.msra.mxu0 0
        %1432 = vmatprep.subr.bf16.mxu0 0
        %1433 = vmatpush1.bf16.msra.mxu0 0
        %1434 = vmatprep.mubr.bf16.mxu0 0
        %1435 = vmatmul.mubr.bf16.gmra.mrb[0].mxu0 %v353
        %v1436 = vpop.f32.mrb[0].mxu0
        %v1437 = vadd.f32 0.0, %v1436
        %v1438 = vpop.f32.mrb[0].mxu0
        %v1439 = vpop.f32.mrb[0].mxu0
        %v1440 = vpop.f32.mrb[0].mxu0
        %1441 = vdwg.mxu0
        %v1442 = vpack.c.bf16 %v1437, %v1437
        %s1443 = scalar_lea.vmem %s5, 48
        %v1444 = vld [vmem:[%s1443] sm:$0xf]
        %v1445 = vld [vmem:[%s1443 + $0x4] sm:$0xf]
        %v1446 = vld [vmem:[%s1443 + $0x8] sm:$0xf]
        %v1447 = vld [vmem:[%s1443 + $0xc] sm:$0xf]
        %v1452 = vunpack.c.l.b16 %v1444
        %v1453 = vunpack.c.l.b16 %v1445
        %v1454 = vunpack.c.l.b16 %v1446
        %v1455 = vunpack.c.l.b16 %v1447
        %v1456 = vpack.c.b16 %v1453, %v1452
        %v1457 = vpack.c.b16 %v1455, %v1454
        %1460 = vmatprep.subr.bf16.mxu0 0
        %1461 = vmatpush1.bf16.msra.mxu0 %v1456
        %1462 = vmatprep.subr.bf16.mxu0 0
        %1463 = vmatpush1.bf16.msra.mxu0 %v1457
        %1464 = vmatprep.subr.bf16.mxu0 0
        %1465 = vmatpush1.bf16.msra.mxu0 0
        %1466 = vmatprep.subr.bf16.mxu0 0
        %1467 = vmatpush1.bf16.msra.mxu0 0
        %1468 = vmatprep.subr.bf16.mxu0 0
        %1469 = vmatpush1.bf16.msra.mxu0 0
        %1470 = vmatprep.subr.bf16.mxu0 0
        %1471 = vmatpush1.bf16.msra.mxu0 0
        %1472 = vmatprep.subr.bf16.mxu0 0
        %1473 = vmatpush1.bf16.msra.mxu0 0
        %1474 = vmatprep.subr.bf16.mxu0 0
        %1475 = vmatpush1.bf16.msra.mxu0 0
        %1476 = vmatprep.subr.bf16.mxu0 0
        %1477 = vmatpush1.bf16.msra.mxu0 0
        %1478 = vmatprep.subr.bf16.mxu0 0
        %1479 = vmatpush1.bf16.msra.mxu0 0
        %1480 = vmatprep.subr.bf16.mxu0 0
        %1481 = vmatpush1.bf16.msra.mxu0 0
        %1482 = vmatprep.subr.bf16.mxu0 0
        %1483 = vmatpush1.bf16.msra.mxu0 0
        %1484 = vmatprep.subr.bf16.mxu0 0
        %1485 = vmatpush1.bf16.msra.mxu0 0
        %1486 = vmatprep.subr.bf16.mxu0 0
        %1487 = vmatpush1.bf16.msra.mxu0 0
        %1488 = vmatprep.subr.bf16.mxu0 0
        %1489 = vmatpush1.bf16.msra.mxu0 0
        %1490 = vmatprep.subr.bf16.mxu0 0
        %1491 = vmatpush1.bf16.msra.mxu0 0
        %1492 = vmatprep.mubr.bf16.mxu0 0
        %1493 = vmatmul.mubr.bf16.gmra.mrb[0].mxu0 %v353
        %v1494 = vpop.f32.mrb[0].mxu0
        %v1495 = vadd.f32 0.0, %v1494
        %v1496 = vpop.f32.mrb[0].mxu0
        %v1497 = vpop.f32.mrb[0].mxu0
        %v1498 = vpop.f32.mrb[0].mxu0
        %1499 = vdwg.mxu0
        %v1500 = vpack.c.bf16 %v1495, %v1495
        %v1502 = vsel %vm510, %v1384, 0
        %v1505 = vsel %vm510, %v1442, 0
        %1507 = vmatprep.subr.bf16.mxu0 0
        %1508 = vmatpush1.bf16.xpose.msra.mxu0 %v1505
        %1509 = vmatprep.subr.bf16.mxu0 0
        %1510 = vmatpush1.bf16.xpose.msra.mxu0 0
        %1511 = vmatprep.subr.bf16.mxu0 0
        %1512 = vmatpush1.bf16.xpose.msra.mxu0 0
        %1513 = vmatprep.subr.bf16.mxu0 0
        %1514 = vmatpush1.bf16.xpose.msra.mxu0 0
        %1515 = vmatprep.subr.bf16.mxu0 0
        %1516 = vmatpush1.bf16.xpose.msra.mxu0 0
        %1517 = vmatprep.subr.bf16.mxu0 0
        %1518 = vmatpush1.bf16.xpose.msra.mxu0 0
        %1519 = vmatprep.subr.bf16.mxu0 0
        %1520 = vmatpush1.bf16.xpose.msra.mxu0 0
        %1521 = vmatprep.subr.bf16.mxu0 0
        %1522 = vmatpush1.bf16.xpose.msra.mxu0 0
        %1523 = vmatprep.subr.bf16.mxu0 0
        %1524 = vmatpush1.bf16.xpose.msra.mxu0 0
        %1525 = vmatprep.subr.bf16.mxu0 0
        %1526 = vmatpush1.bf16.xpose.msra.mxu0 0
        %1527 = vmatprep.subr.bf16.mxu0 0
        %1528 = vmatpush1.bf16.xpose.msra.mxu0 0
        %1529 = vmatprep.subr.bf16.mxu0 0
        %1530 = vmatpush1.bf16.xpose.msra.mxu0 0
        %1531 = vmatprep.subr.bf16.mxu0 0
        %1532 = vmatpush1.bf16.xpose.msra.mxu0 0
        %1533 = vmatprep.subr.bf16.mxu0 0
        %1534 = vmatpush1.bf16.xpose.msra.mxu0 0
        %1535 = vmatprep.subr.bf16.mxu0 0
        %1536 = vmatpush1.bf16.xpose.msra.mxu0 0
        %1537 = vmatprep.subr.bf16.mxu0 0
        %1538 = vmatpush1.bf16.xpose.msra.mxu0 0
        %1539 = vmatprep.mubr.bf16.mxu0 0
        %1540 = vmatmul.mubr.bf16.gmra.mrb[0].mxu0 %v1502
        %v1541 = vpop.f32.mrb[0].mxu0
        %v1542 = vadd.f32 0.0, %v1541
        %v1543 = vpop.f32.mrb[0].mxu0
        %v1544 = vpop.f32.mrb[0].mxu0
        %v1545 = vpop.f32.mrb[0].mxu0
        %1546 = vdwg.mxu0
        %v1547 = vsel %vm510, %v1542, -inf
        %1548 = vmax.xlane.f32.xlu0 %v1547
        %v1549 = vpop.xlane.xlu0 %1548
        %v1550 = vsub.f32 %v1542, %v1549
        %v1551 = vmul.f32 %v1550, 1.442695
        %v1552 = vpow.pop %v1551
        %v1553 = vsel %vm510, %v1552, 0.0
        %1554 = vadd.xlane.f32.xlu0 %v1553
        %v1555 = vpop.xlane.xlu0 %1554
        %v1556 = vrcp.pop %v1555
        %v1557 = vmul.f32 %v1552, %v1556
        %v1558 = vpack.c.bf16 %v1557, %v1557
        %v1560 = vsel %vm510, %v1558, 0
        %v1563 = vsel %vm572, %v1500, 0
        %1565 = vmatprep.subr.bf16.mxu0 0
        %1566 = vmatpush1.bf16.msra.mxu0 %v1563
        %1567 = vmatprep.subr.bf16.mxu0 0
        %1568 = vmatpush1.bf16.msra.mxu0 0
        %1569 = vmatprep.subr.bf16.mxu0 0
        %1570 = vmatpush1.bf16.msra.mxu0 0
        %1571 = vmatprep.subr.bf16.mxu0 0
        %1572 = vmatpush1.bf16.msra.mxu0 0
        %1573 = vmatprep.subr.bf16.mxu0 0
        %1574 = vmatpush1.bf16.msra.mxu0 0
        %1575 = vmatprep.subr.bf16.mxu0 0
        %1576 = vmatpush1.bf16.msra.mxu0 0
        %1577 = vmatprep.subr.bf16.mxu0 0
        %1578 = vmatpush1.bf16.msra.mxu0 0
        %1579 = vmatprep.subr.bf16.mxu0 0
        %1580 = vmatpush1.bf16.msra.mxu0 0
        %1581 = vmatprep.subr.bf16.mxu0 0
        %1582 = vmatpush1.bf16.msra.mxu0 0
        %1583 = vmatprep.subr.bf16.mxu0 0
        %1584 = vmatpush1.bf16.msra.mxu0 0
        %1585 = vmatprep.subr.bf16.mxu0 0
        %1586 = vmatpush1.bf16.msra.mxu0 0
        %1587 = vmatprep.subr.bf16.mxu0 0
        %1588 = vmatpush1.bf16.msra.mxu0 0
        %1589 = vmatprep.subr.bf16.mxu0 0
        %1590 = vmatpush1.bf16.msra.mxu0 0
        %1591 = vmatprep.subr.bf16.mxu0 0
        %1592 = vmatpush1.bf16.msra.mxu0 0
        %1593 = vmatprep.subr.bf16.mxu0 0
        %1594 = vmatpush1.bf16.msra.mxu0 0
        %1595 = vmatprep.subr.bf16.mxu0 0
        %1596 = vmatpush1.bf16.msra.mxu0 0
        %1597 = vmatprep.mubr.bf16.mxu0 0
        %1598 = vmatmul.mubr.bf16.gmra.mrb[0].mxu0 %v1560
        %v1599 = vpop.f32.mrb[0].mxu0
        %v1600 = vadd.f32 0.0, %v1599
        %v1601 = vpop.f32.mrb[0].mxu0
        %v1602 = vpop.f32.mrb[0].mxu0
        %v1603 = vpop.f32.mrb[0].mxu0
        %1604 = vdwg.mxu0
        %v1605 = vld [vmem:[#allocation2] sm:$0xff]
        %v1606 = vpack.c.bf16 %v1600, %v1600
        %s1607 = scalar_lea.vmem %s6, 12
        %v1608 = vld [vmem:[%s1607] sm:$0xf]
        %v1610 = vsel %vm510, %v1606, 0
        %v1613 = vsel %vm572, %v1608, 0
        %1615 = vmatprep.subr.bf16.mxu0 0
        %1616 = vmatpush1.bf16.msra.mxu0 %v1613
        %1617 = vmatprep.subr.bf16.mxu0 0
        %1618 = vmatpush1.bf16.msra.mxu0 0
        %1619 = vmatprep.subr.bf16.mxu0 0
        %1620 = vmatpush1.bf16.msra.mxu0 0
        %1621 = vmatprep.subr.bf16.mxu0 0
        %1622 = vmatpush1.bf16.msra.mxu0 0
        %1623 = vmatprep.subr.bf16.mxu0 0
        %1624 = vmatpush1.bf16.msra.mxu0 0
        %1625 = vmatprep.subr.bf16.mxu0 0
        %1626 = vmatpush1.bf16.msra.mxu0 0
        %1627 = vmatprep.subr.bf16.mxu0 0
        %1628 = vmatpush1.bf16.msra.mxu0 0
        %1629 = vmatprep.subr.bf16.mxu0 0
        %1630 = vmatpush1.bf16.msra.mxu0 0
        %1631 = vmatprep.subr.bf16.mxu0 0
        %1632 = vmatpush1.bf16.msra.mxu0 0
        %1633 = vmatprep.subr.bf16.mxu0 0
        %1634 = vmatpush1.bf16.msra.mxu0 0
        %1635 = vmatprep.subr.bf16.mxu0 0
        %1636 = vmatpush1.bf16.msra.mxu0 0
        %1637 = vmatprep.subr.bf16.mxu0 0
        %1638 = vmatpush1.bf16.msra.mxu0 0
        %1639 = vmatprep.subr.bf16.mxu0 0
        %1640 = vmatpush1.bf16.msra.mxu0 0
        %1641 = vmatprep.subr.bf16.mxu0 0
        %1642 = vmatpush1.bf16.msra.mxu0 0
        %1643 = vmatprep.subr.bf16.mxu0 0
        %1644 = vmatpush1.bf16.msra.mxu0 0
        %1645 = vmatprep.subr.bf16.mxu0 0
        %1646 = vmatpush1.bf16.msra.mxu0 0
        %1647 = vmatprep.mubr.bf16.mxu0 0
        %1648 = vmatmul.mubr.bf16.gmra.mrb[0].mxu0 %v1610
        %v1649 = vpop.f32.mrb[0].mxu0
        %v1650 = vadd.f32 0.0, %v1649
        %v1651 = vpop.f32.mrb[0].mxu0
        %v1652 = vpop.f32.mrb[0].mxu0
        %v1653 = vpop.f32.mrb[0].mxu0
        %1654 = vdwg.mxu0
        %v1655 = vadd.f32 %v1605, %v1650
        %1656 = vst.msk [vmem:[#allocation2] sm:$0xff] %vm305, %v1655
        %v1657 = vld [vmem:[%s300] sm:$0xff]
        %v1658 = vld [vmem:[#allocation2] sm:$0xff]
        %v1659 = vadd.f32 %v1657, %v1658
        %v1660 = vld [vmem:[%s7] sm:$0x1]
        %v1662 = vlaneseq
        %v1663 = vshrl.u32 %v1662, 7
        %v1664 = vsub.s32 0, %v1663
        %v1665 = vrot.slane %v1660, %v1664
        %v1667 = vadd.f32 %v1659, %v1665
        %1668 = vst.msk [vmem:[%s296] sm:$0xff] %vm305, %v1667
        %s1669 = sand.u32 %s203, 1
        %s1670 = scalar_lea.sflag [#allocation4], %s1669
        %s1671 = sand.u32 %s203, 1
        %s1672 = smul.addr %s1671, 8
        %s1673 = scalar_lea.vmem [#allocation3], %s1672
        // Predicated region
        $region53: #{tpu_custom_call.1} parent=51 // pred_check
          %p1674 = pneg %p213
        $region54: #{tpu_custom_call.1} parent=51 // pred_check_branch
          %1676 = sbr.rel (%p1674) target = $region56
        $region55: #{tpu_custom_call.1} parent=51 // pred_region
          %s1678 = ssub.s32 128, 128
          %1679 = vsyncadd %s1670, %s1678
          %s1680 = smul.addr %s22, 128
          %s1681 = scalar_lea.hbm %s8, %s1680
          %s1683 = sshll.u32 %s1673, 4
          %s1684 = int_to_ptr.vmem [resolvable:$true] %s1683
          %1686 = dma.vmem_to_hbm [thread:$0]  %s1684, 128, %s1681, %s1670
        $region56: #{tpu_custom_call.1} parent=51 // pred_fallthru
          _
      $region52: #{tpu_custom_call.1} parent=5 // pred_fallthru
        _
      %p1687 = scmp.le.s32.totalorder 2, %s17
      // Predicated region
      $region57: #{tpu_custom_call.1} parent=5 // pred_check
        %p1688 = pneg %p1687
      $region58: #{tpu_custom_call.1} parent=5 // pred_check_branch
        %1690 = sbr.rel (%p1688) target = $region60
      $region59: #{tpu_custom_call.1} parent=5 // pred_region
        %s1691 = ssub.s32 %s17, 2
        // Predicated region
        $region61: #{tpu_custom_call.1} parent=59 // pred_check
          %p1692 = pneg %p219
        $region62: #{tpu_custom_call.1} parent=59 // pred_check_branch
          %1694 = sbr.rel (%p1692) target = $region64
        $region63: #{tpu_custom_call.1} parent=59 // pred_region
          %s1695 = sand.u32 %s204, 1
          %s1696 = scalar_lea.sflag [#allocation4], %s1695
          %s1697 = sand.u32 %s204, 1
          %s1698 = smul.addr %s1697, 8
          %s1699 = scalar_lea.vmem [#allocation3], %s1698
          %1700 = dma.done %s1696, 128
        $region64: #{tpu_custom_call.1} parent=59 // pred_fallthru
          _
      $region60: #{tpu_custom_call.1} parent=5 // pred_fallthru
        _
    $region6: #{tpu_custom_call.1} parent=1 // loop_footer
      %s21 = sadd.s32 1, %s17
    $region7: #{tpu_custom_call.1} parent=1 // loop_footer_branch
      %16 = sbr.rel target = $region3
    $region8: #{tpu_custom_call.1} parent=1 // loop_exit
      _
    %1701 = vsyncpa [#allocation4], 1
    %s1702 = scalar_lea.sflag [#allocation4], 1
    %1703 = vsyncpa %s1702, 1

</llo_original>
